<compile_context>
chip_gen: v7x
topology: tpu7x:2x2x1
jax: 0.10.0
libtpu: 0.0.40
codegen_flags: <defaults>
</compile_context>

<pallas_src>
import functools

import jax
import jax.numpy as jnp
from jax.experimental import pallas as pl
from jax.experimental.pallas import tpu as pltpu


def _round_up(x: int, m: int) -> int:
    return ((x + m - 1) // m) * m


# ---------------------------------------------------------------------------
# Kernel
# ---------------------------------------------------------------------------
def _hyper_kernel(ctx_ref,
                  w1_ref, b1_ref,        # fused first layer:  (D, 4D) bf16, (1, 4D) f32
                  w2k_ref, b2k_ref,      # module-k second:    (2D, D) bf16, (1, D)  f32
                  w2v_ref, b2v_ref,      # module-v second:    (2D, D) bf16, (1, D)  f32
                  outk_ref, outv_ref,
                  *, multiplier: float, hidden: int):
    """One row-tile of context -> both hypernetwork modules (k and v)."""
    x = ctx_ref[...]                                   # (TM, D)
    x_f32 = x.astype(jnp.float32)                      # residual path (full precision)
    x_bf16 = x.astype(jnp.bfloat16)                    # MXU input

    # Fused first layer for both modules: (TM, D) @ (D, 4D) -> (TM, 4D), f32 acc.
    h = jnp.dot(x_bf16, w1_ref[...], preferred_element_type=jnp.float32)
    h = h + b1_ref[...]                                # f32 bias add
    h_bf16 = h.astype(jnp.bfloat16)

    h_k = h_bf16[:, :hidden]                           # (TM, 2D)
    h_v = h_bf16[:, hidden:]                           # (TM, 2D)

    # Module[0] (k path): x + (Linear2(Linear1(x))) * multiplier
    y_k = jnp.dot(h_k, w2k_ref[...], preferred_element_type=jnp.float32)
    y_k = y_k + b2k_ref[...]
    outk_ref[...] = (x_f32 + y_k * multiplier).astype(outk_ref.dtype)

    # Module[1] (v path)
    y_v = jnp.dot(h_v, w2v_ref[...], preferred_element_type=jnp.float32)
    y_v = y_v + b2v_ref[...]
    outv_ref[...] = (x_f32 + y_v * multiplier).astype(outv_ref.dtype)


# ---------------------------------------------------------------------------
# pallas_call builder / wrapper
# ---------------------------------------------------------------------------
def _build_pallas_call(M_pad, D, H, tm, out_dtype, multiplier,
                       single_buffer_weights, vmem_limit_bytes, cost):
    kernel = functools.partial(_hyper_kernel,
                               multiplier=float(multiplier), hidden=int(H))

    w_kwargs = {}
    if single_buffer_weights:
        # Weights/biases have a constant index_map; single-buffering them halves
        # their VMEM footprint (matters for v7x's 64 MiB VMEM at large D).
        w_kwargs = dict(pipeline_mode=pl.Buffered(1))

    def const_spec(shape):
        return pl.BlockSpec(shape, lambda i: (0, 0), **w_kwargs)

    row_spec = pl.BlockSpec((tm, D), lambda i: (i, 0))

    return pl.pallas_call(
        kernel,
        out_shape=(jax.ShapeDtypeStruct((M_pad, D), out_dtype),
                   jax.ShapeDtypeStruct((M_pad, D), out_dtype)),
        grid_spec=pltpu.PrefetchScalarGridSpec(
            num_scalar_prefetch=0,
            grid=(M_pad // tm,),
            in_specs=[
                row_spec,                    # context row tile
                const_spec((D, 2 * H)),      # fused W1  (k | v)
                const_spec((1, 2 * H)),      # fused b1  (k | v)
                const_spec((H, D)),          # W2 (k)
                const_spec((1, D)),          # b2 (k)
                const_spec((H, D)),          # W2 (v)
                const_spec((1, D)),          # b2 (v)
            ],
            out_specs=[row_spec, row_spec],
        ),
        compiler_params=pltpu.CompilerParams(
            dimension_semantics=("parallel",),      # row axis shards across TCs (v7x)
            vmem_limit_bytes=int(vmem_limit_bytes)),
        cost_estimate=cost,
    )


def hypernetwork_apply(context, packed, *, multiplier=1.0, tm_max=256):
    """Apply both HypernetworkModules of the matching size to `context`.

    context: (..., D) array with D % 128 == 0; returns (ctx_k, ctx_v), same shape.
    packed:  dict from pack_module_pair (fused bf16 weights, f32 biases).
    """
    orig_shape = context.shape
    D = orig_shape[-1]
    if D % 128 != 0:
        raise ValueError("context feature dim (enable size) must be a multiple of 128")

    ctx2d = context.reshape(-1, D)
    M = ctx2d.shape[0]

    # Row tile: as large as tm_max (multiple of 8), but never larger than needed.
    tm = min(int(tm_max), _round_up(M, 8))
    tm = max(8, (tm // 8) * 8)
    M_pad = _round_up(M, tm)
    if M_pad != M:
        ctx2d = jnp.pad(ctx2d, ((0, M_pad - M), (0, 0)))

    w1, b1 = packed["w1"], packed["b1"]
    w2k, b2k = packed["w2k"], packed["b2k"]
    w2v, b2v = packed["w2v"], packed["b2v"]
    H = w2k.shape[0]                      # 2 * D

    # --- cost estimate (for XLA scheduling around the custom call) ---
    ctx_bytes = ctx2d.dtype.itemsize
    weight_bytes = ((w1.size + w2k.size + w2v.size) * w1.dtype.itemsize
                    + (b1.size + b2k.size + b2v.size) * b1.dtype.itemsize)
    flops = 2 * M_pad * D * (4 * D) + 2 * (2 * M_pad * H * D)   # = 16 * M * D^2
    bytes_accessed = 3 * M_pad * D * ctx_bytes + weight_bytes
    cost = pl.CostEstimate(flops=int(flops), transcendentals=0,
                           bytes_accessed=int(bytes_accessed))

    # --- VMEM budget: weights (ideally single-buffered) + double-buffered row
    # tiles + f32 intermediates, with 2x headroom; clamped to [32 MiB, 64 MiB]
    # so the same limit is legal on v5e/v6e (128 MiB physical) and v7x (64 MiB).
    tile_bytes = tm * D * ctx_bytes * 2 * 3        # ctx + 2 outputs, double-buffered
    inter_bytes = tm * 4 * D * 4 * 2               # (tm, 4D) f32 intermediate + slack
    need = weight_bytes + tile_bytes + inter_bytes
    vmem_limit = min(max(2 * need, 32 * 1024 * 1024), 64 * 1024 * 1024)

    args = (ctx2d, w1, b1, w2k, b2k, w2v, b2v)
    try:
        call = _build_pallas_call(M_pad, D, H, tm, context.dtype, multiplier,
                                  True, vmem_limit, cost)
        out_k, out_v = call(*args)
    except Exception:
        # Fallback if single-buffered weight specs (pl.Buffered(1)) are not
        # supported by this jax/Mosaic build: use default double buffering.
        call = _build_pallas_call(M_pad, D, H, tm, context.dtype, multiplier,
                                  False, vmem_limit, cost)
        out_k, out_v = call(*args)

    out_k = out_k[:M].reshape(orig_shape)
    out_v = out_v[:M].reshape(orig_shape)
    return out_k, out_v


# ---------------------------------------------------------------------------
# Parameter init / packing (mirrors init_weight(..., 'Normal'))
# ---------------------------------------------------------------------------
def init_hypernetwork_module_params(key, dim, layer_structure=(1, 2, 1),
                                    normal_std=0.01, dtype=jnp.float32):
    """weight ~ N(0, 0.01), bias = 0.  Weights stored pre-transposed (in, out)."""
    d_in1, d_out1 = dim * layer_structure[0], dim * layer_structure[1]
    d_in2, d_out2 = dim * layer_structure[1], dim * layer_structure[2]
    k1, k2 = jax.random.split(key)
    return {
        "w1": (jax.random.normal(k1, (d_in1, d_out1), dtype) * normal_std),
        "b1": jnp.zeros((d_out1,), dtype),
        "w2": (jax.random.normal(k2, (d_in2, d_out2), dtype) * normal_std),
        "b2": jnp.zeros((d_out2,), dtype),
    }


def pack_module_pair(params_k, params_v):
    """Fuse the two modules' first linears along the output dim, cast to bf16."""
    w1 = jnp.concatenate([params_k["w1"], params_v["w1"]], axis=1)
    b1 = jnp.concatenate([params_k["b1"], params_v["b1"]], axis=0)
    return {
        "w1": w1.astype(jnp.bfloat16),                          # (D, 4D)
        "b1": b1.reshape(1, -1).astype(jnp.float32),            # (1, 4D)
        "w2k": params_k["w2"].astype(jnp.bfloat16),             # (2D, D)
        "b2k": params_k["b2"].reshape(1, -1).astype(jnp.float32),
        "w2v": params_v["w2"].astype(jnp.bfloat16),             # (2D, D)
        "b2v": params_v["b2"].reshape(1, -1).astype(jnp.float32),
    }


class HypernetworkPallas:
    """JAX/Pallas port of Hypernetwork (forward pass only).

    Implements the default configuration: layer_structure=[1,2,1],
    activation='linear', no layer-norm, dropout inactive.
    """
    # TODO(synk): non-default activation / layer-norm / dropout variants are not
    # implemented in the fused kernel (defaults in the reference module are off).

    def __init__(self, key, multiplier=1.0, enable_sizes=(128,),
                 layer_structure=(1, 2, 1), dtype=jnp.float32):
        assert tuple(layer_structure) == (1, 2, 1), \
            "fused kernel is specialized to the default layer_structure [1, 2, 1]"
        self.multiplier = multiplier
        self.enable_sizes = list(enable_sizes)
        self.layers = {}    # raw f32 params (reference / state-dict equivalent)
        self.packed = {}    # fused bf16 weights for the kernel
        for size in self.enable_sizes:
            key, ka, kb = jax.random.split(key, 3)
            pk = init_hypernetwork_module_params(ka, size, layer_structure, dtype=dtype)
            pv = init_hypernetwork_module_params(kb, size, layer_structure, dtype=dtype)
            self.layers[size] = (pk, pv)
            self.packed[size] = pack_module_pair(pk, pv)

    def forward(self, x, context, *, tm_max=256):
        size = context.shape[-1]
        assert size in self.enable_sizes
        return hypernetwork_apply(context, self.packed[size],
                                  multiplier=self.multiplier, tm_max=tm_max)

    __call__ = forward


def _reference(context, pk, pv, multiplier):
    def mod(c, p):
        h = c @ p["w1"] + p["b1"]
        y = h @ p["w2"] + p["b2"]
        return c + y * multiplier
    return mod(context, pk), mod(context, pv)


if __name__ == "__main__":
    key = jax.random.PRNGKey(0)
    k_net, k_x, k_ctx1, k_ctx2 = jax.random.split(key, 4)

    DIM = 128           # the "size" (cross-attention context dim); must be % 128
    net = HypernetworkPallas(k_net, multiplier=1.0, enable_sizes=(DIM,))

    # x is unused by Hypernetwork.forward (only context is transformed),
    # but construct it to mirror the PyTorch call signature.
    x = jax.random.normal(k_x, (2, 4, 16, 16), jnp.float32)

    pk, pv = net.layers[DIM]

    # Test 1: small context, M = 2*7 = 14 rows (exercises row padding).
    ctx1 = jax.random.normal(k_ctx1, (2, 7, DIM), jnp.float32)
    out_k1, out_v1 = net(x, ctx1)
    jax.block_until_ready((out_k1, out_v1))
    ref_k1, ref_v1 = _reference(ctx1, pk, pv, net.multiplier)
    assert out_k1.shape == ctx1.shape and out_v1.shape == ctx1.shape
    assert jnp.allclose(out_k1, ref_k1, atol=1e-2, rtol=1e-2)
    assert jnp.allclose(out_v1, ref_v1, atol=1e-2, rtol=1e-2)

    # Test 2: longer context with a small tile cap -> multi-step grid + padding.
    ctx2 = jax.random.normal(k_ctx2, (2, 77, DIM), jnp.float32)
    out_k2, out_v2 = hypernetwork_apply(ctx2, net.packed[DIM],
                                        multiplier=net.multiplier, tm_max=64)
    jax.block_until_ready((out_k2, out_v2))
    ref_k2, ref_v2 = _reference(ctx2, pk, pv, net.multiplier)
    assert out_k2.shape == ctx2.shape and out_v2.shape == ctx2.shape
    assert jnp.allclose(out_k2, ref_k2, atol=1e-2, rtol=1e-2)
    assert jnp.allclose(out_v2, ref_v2, atol=1e-2, rtol=1e-2)

    print("KERNEL_OK")
</pallas_src>

<mosaic_0001>
module attributes {stable_mosaic.version = 11 : i64} {
  func.func @_hyper_kernel(%arg0: i32, %arg1: memref<16x128xf32, #tpu.memory_space<vmem>>, %arg2: memref<128x512xbf16, #tpu.memory_space<vmem>>, %arg3: memref<1x512xf32, #tpu.memory_space<vmem>>, %arg4: memref<256x128xbf16, #tpu.memory_space<vmem>>, %arg5: memref<1x128xf32, #tpu.memory_space<vmem>>, %arg6: memref<256x128xbf16, #tpu.memory_space<vmem>>, %arg7: memref<1x128xf32, #tpu.memory_space<vmem>>, %arg8: memref<16x128xf32, #tpu.memory_space<vmem>>, %arg9: memref<16x128xf32, #tpu.memory_space<vmem>>) attributes {dimension_semantics = [#tpu.dimension_semantics<parallel>], iteration_bounds = array<i64: 1>, scalar_prefetch = 0 : i64, scratch_operands = 0 : i64, tpu.core_type = #tpu.core_type<tc>, window_params = [{transform_indices = @transform_0, window_bounds = array<i64: 16, 128>}, {pipeline_mode = #tpu.pipeline_mode<synchronous>, transform_indices = @transform_1, window_bounds = array<i64: 128, 512>}, {pipeline_mode = #tpu.pipeline_mode<synchronous>, transform_indices = @transform_2, window_bounds = array<i64: 1, 512>}, {pipeline_mode = #tpu.pipeline_mode<synchronous>, transform_indices = @transform_3, window_bounds = array<i64: 256, 128>}, {pipeline_mode = #tpu.pipeline_mode<synchronous>, transform_indices = @transform_4, window_bounds = array<i64: 1, 128>}, {pipeline_mode = #tpu.pipeline_mode<synchronous>, transform_indices = @transform_5, window_bounds = array<i64: 256, 128>}, {pipeline_mode = #tpu.pipeline_mode<synchronous>, transform_indices = @transform_6, window_bounds = array<i64: 1, 128>}, {transform_indices = @transform_7, window_bounds = array<i64: 16, 128>}, {transform_indices = @transform_8, window_bounds = array<i64: 16, 128>}]} {
    %c0 = arith.constant 0 : index
    %c0_0 = arith.constant 0 : index
    %0 = vector.load %arg1[%c0, %c0_0] : memref<16x128xf32, #tpu.memory_space<vmem>>, vector<16x128xf32>
    %1 = arith.truncf %0 : vector<16x128xf32> to vector<16x128xbf16>
    %c0_1 = arith.constant 0 : index
    %c0_2 = arith.constant 0 : index
    %2 = vector.load %arg2[%c0_1, %c0_2] : memref<128x512xbf16, #tpu.memory_space<vmem>>, vector<128x512xbf16>
    %cst = arith.constant dense<0.000000e+00> : vector<16x512xf32>
    %3 = tpu.matmul %1, %2, %cst {dimension_numbers = #tpu.dot_dimension_numbers<[1], [0], [0], [1], [0, 0, 1, 1], [], []>} : vector<16x128xbf16>, vector<128x512xbf16>, vector<16x512xf32> -> vector<16x512xf32>
    %c0_3 = arith.constant 0 : index
    %c0_4 = arith.constant 0 : index
    %4 = vector.load %arg3[%c0_3, %c0_4] : memref<1x512xf32, #tpu.memory_space<vmem>>, vector<1x512xf32>
    %5 = vector.broadcast %4 : vector<1x512xf32> to vector<16x512xf32>
    %6 = arith.addf %3, %5 : vector<16x512xf32>
    %7 = arith.truncf %6 : vector<16x512xf32> to vector<16x512xbf16>
    %8 = vector.extract_strided_slice %7 {offsets = [0, 0], sizes = [16, 256], strides = [1, 1]} : vector<16x512xbf16> to vector<16x256xbf16>
    %9 = vector.extract_strided_slice %7 {offsets = [0, 256], sizes = [16, 256], strides = [1, 1]} : vector<16x512xbf16> to vector<16x256xbf16>
    %c0_5 = arith.constant 0 : index
    %c0_6 = arith.constant 0 : index
    %10 = vector.load %arg4[%c0_5, %c0_6] : memref<256x128xbf16, #tpu.memory_space<vmem>>, vector<256x128xbf16>
    %cst_7 = arith.constant dense<0.000000e+00> : vector<16x128xf32>
    %11 = tpu.matmul %8, %10, %cst_7 {dimension_numbers = #tpu.dot_dimension_numbers<[1], [0], [0], [1], [0, 0, 1, 1], [], []>} : vector<16x256xbf16>, vector<256x128xbf16>, vector<16x128xf32> -> vector<16x128xf32>
    %c0_8 = arith.constant 0 : index
    %c0_9 = arith.constant 0 : index
    %12 = vector.load %arg5[%c0_8, %c0_9] : memref<1x128xf32, #tpu.memory_space<vmem>>, vector<1x128xf32>
    %13 = vector.broadcast %12 : vector<1x128xf32> to vector<16x128xf32>
    %14 = arith.addf %11, %13 : vector<16x128xf32>
    %cst_10 = arith.constant 1.000000e+00 : f32
    %15 = vector.broadcast %cst_10 : f32 to vector<16x128xf32>
    %16 = arith.mulf %14, %15 : vector<16x128xf32>
    %17 = arith.addf %0, %16 : vector<16x128xf32>
    %c0_11 = arith.constant 0 : index
    %c0_12 = arith.constant 0 : index
    %18 = vector.load %arg8[%c0_11, %c0_12] : memref<16x128xf32, #tpu.memory_space<vmem>>, vector<16x128xf32>
    tpu.vector_store %arg8[%c0_11, %c0_12], %17 {strides = array<i32>} : memref<16x128xf32, #tpu.memory_space<vmem>>, vector<16x128xf32>,
    %c0_13 = arith.constant 0 : index
    %c0_14 = arith.constant 0 : index
    %19 = vector.load %arg6[%c0_13, %c0_14] : memref<256x128xbf16, #tpu.memory_space<vmem>>, vector<256x128xbf16>
    %cst_15 = arith.constant dense<0.000000e+00> : vector<16x128xf32>
    %20 = tpu.matmul %9, %19, %cst_15 {dimension_numbers = #tpu.dot_dimension_numbers<[1], [0], [0], [1], [0, 0, 1, 1], [], []>} : vector<16x256xbf16>, vector<256x128xbf16>, vector<16x128xf32> -> vector<16x128xf32>
    %c0_16 = arith.constant 0 : index
    %c0_17 = arith.constant 0 : index
    %21 = vector.load %arg7[%c0_16, %c0_17] : memref<1x128xf32, #tpu.memory_space<vmem>>, vector<1x128xf32>
    %22 = vector.broadcast %21 : vector<1x128xf32> to vector<16x128xf32>
    %23 = arith.addf %20, %22 : vector<16x128xf32>
    %cst_18 = arith.constant 1.000000e+00 : f32
    %24 = vector.broadcast %cst_18 : f32 to vector<16x128xf32>
    %25 = arith.mulf %23, %24 : vector<16x128xf32>
    %26 = arith.addf %0, %25 : vector<16x128xf32>
    %c0_19 = arith.constant 0 : index
    %c0_20 = arith.constant 0 : index
    %27 = vector.load %arg9[%c0_19, %c0_20] : memref<16x128xf32, #tpu.memory_space<vmem>>, vector<16x128xf32>
    tpu.vector_store %arg9[%c0_19, %c0_20], %26 {strides = array<i32>} : memref<16x128xf32, #tpu.memory_space<vmem>>, vector<16x128xf32>,
    return
  }
  func.func @transform_0(%arg0: i32) -> (i32, i32) {
    %c0_i32 = arith.constant 0 : i32
    %c0_i32_0 = arith.constant 0 : i32
    return %arg0, %c0_i32 : i32, i32
  }
  func.func @transform_1(%arg0: i32) -> (i32, i32) {
    %c0_i32 = arith.constant 0 : i32
    %c0_i32_0 = arith.constant 0 : i32
    %c0_i32_1 = arith.constant 0 : i32
    return %c0_i32, %c0_i32_0 : i32, i32
  }
  func.func @transform_2(%arg0: i32) -> (i32, i32) {
    %c0_i32 = arith.constant 0 : i32
    %c0_i32_0 = arith.constant 0 : i32
    %c0_i32_1 = arith.constant 0 : i32
    return %c0_i32, %c0_i32_0 : i32, i32
  }
  func.func @transform_3(%arg0: i32) -> (i32, i32) {
    %c0_i32 = arith.constant 0 : i32
    %c0_i32_0 = arith.constant 0 : i32
    %c0_i32_1 = arith.constant 0 : i32
    return %c0_i32, %c0_i32_0 : i32, i32
  }
  func.func @transform_4(%arg0: i32) -> (i32, i32) {
    %c0_i32 = arith.constant 0 : i32
    %c0_i32_0 = arith.constant 0 : i32
    %c0_i32_1 = arith.constant 0 : i32
    return %c0_i32, %c0_i32_0 : i32, i32
  }
  func.func @transform_5(%arg0: i32) -> (i32, i32) {
    %c0_i32 = arith.constant 0 : i32
    %c0_i32_0 = arith.constant 0 : i32
    %c0_i32_1 = arith.constant 0 : i32
    return %c0_i32, %c0_i32_0 : i32, i32
  }
  func.func @transform_6(%arg0: i32) -> (i32, i32) {
    %c0_i32 = arith.constant 0 : i32
    %c0_i32_0 = arith.constant 0 : i32
    %c0_i32_1 = arith.constant 0 : i32
    return %c0_i32, %c0_i32_0 : i32, i32
  }
  func.func @transform_7(%arg0: i32) -> (i32, i32) {
    %c0_i32 = arith.constant 0 : i32
    %c0_i32_0 = arith.constant 0 : i32
    return %arg0, %c0_i32 : i32, i32
  }
  func.func @transform_8(%arg0: i32) -> (i32, i32) {
    %c0_i32 = arith.constant 0 : i32
    %c0_i32_0 = arith.constant 0 : i32
    return %arg0, %c0_i32 : i32, i32
  }
}

module attributes {stable_mosaic.version = 11 : i64} {
  func.func @_hyper_kernel(%arg0: i32, %arg1: memref<16x128xf32, #tpu.memory_space<vmem>>, %arg2: memref<128x512xbf16, #tpu.memory_space<vmem>>, %arg3: memref<1x512xf32, #tpu.memory_space<vmem>>, %arg4: memref<256x128xbf16, #tpu.memory_space<vmem>>, %arg5: memref<1x128xf32, #tpu.memory_space<vmem>>, %arg6: memref<256x128xbf16, #tpu.memory_space<vmem>>, %arg7: memref<1x128xf32, #tpu.memory_space<vmem>>, %arg8: memref<16x128xf32, #tpu.memory_space<vmem>>, %arg9: memref<16x128xf32, #tpu.memory_space<vmem>>) attributes {dimension_semantics = [#tpu.dimension_semantics<parallel>], iteration_bounds = array<i64: 1>, scalar_prefetch = 0 : i64, scratch_operands = 0 : i64, tpu.core_type = #tpu.core_type<tc>, window_params = [{transform_indices = @transform_0, window_bounds = array<i64: 16, 128>}, {pipeline_mode = #tpu.pipeline_mode<synchronous>, transform_indices = @transform_1, window_bounds = array<i64: 128, 512>}, {pipeline_mode = #tpu.pipeline_mode<synchronous>, transform_indices = @transform_2, window_bounds = array<i64: 1, 512>}, {pipeline_mode = #tpu.pipeline_mode<synchronous>, transform_indices = @transform_3, window_bounds = array<i64: 256, 128>}, {pipeline_mode = #tpu.pipeline_mode<synchronous>, transform_indices = @transform_4, window_bounds = array<i64: 1, 128>}, {pipeline_mode = #tpu.pipeline_mode<synchronous>, transform_indices = @transform_5, window_bounds = array<i64: 256, 128>}, {pipeline_mode = #tpu.pipeline_mode<synchronous>, transform_indices = @transform_6, window_bounds = array<i64: 1, 128>}, {transform_indices = @transform_7, window_bounds = array<i64: 16, 128>}, {transform_indices = @transform_8, window_bounds = array<i64: 16, 128>}]} {
    %c0 = arith.constant 0 : index
    %c0_0 = arith.constant 0 : index
    %0 = vector.load %arg1[%c0, %c0_0] : memref<16x128xf32, #tpu.memory_space<vmem>>, vector<16x128xf32>
    %1 = arith.truncf %0 : vector<16x128xf32> to vector<16x128xbf16>
    %c0_1 = arith.constant 0 : index
    %c0_2 = arith.constant 0 : index
    %2 = vector.load %arg2[%c0_1, %c0_2] : memref<128x512xbf16, #tpu.memory_space<vmem>>, vector<128x512xbf16>
    %cst = arith.constant dense<0.000000e+00> : vector<16x512xf32>
    %3 = tpu.matmul %1, %2, %cst {dimension_numbers = #tpu.dot_dimension_numbers<[1], [0], [0], [1], [0, 0, 1, 1], [], []>} : vector<16x128xbf16>, vector<128x512xbf16>, vector<16x512xf32> -> vector<16x512xf32>
    %c0_3 = arith.constant 0 : index
    %c0_4 = arith.constant 0 : index
    %4 = vector.load %arg3[%c0_3, %c0_4] : memref<1x512xf32, #tpu.memory_space<vmem>>, vector<1x512xf32>
    %5 = vector.broadcast %4 : vector<1x512xf32> to vector<16x512xf32>
    %6 = arith.addf %3, %5 : vector<16x512xf32>
    %7 = arith.truncf %6 : vector<16x512xf32> to vector<16x512xbf16>
    %8 = vector.extract_strided_slice %7 {offsets = [0, 0], sizes = [16, 256], strides = [1, 1]} : vector<16x512xbf16> to vector<16x256xbf16>
    %9 = vector.extract_strided_slice %7 {offsets = [0, 256], sizes = [16, 256], strides = [1, 1]} : vector<16x512xbf16> to vector<16x256xbf16>
    %c0_5 = arith.constant 0 : index
    %c0_6 = arith.constant 0 : index
    %10 = vector.load %arg4[%c0_5, %c0_6] : memref<256x128xbf16, #tpu.memory_space<vmem>>, vector<256x128xbf16>
    %cst_7 = arith.constant dense<0.000000e+00> : vector<16x128xf32>
    %11 = tpu.matmul %8, %10, %cst_7 {dimension_numbers = #tpu.dot_dimension_numbers<[1], [0], [0], [1], [0, 0, 1, 1], [], []>} : vector<16x256xbf16>, vector<256x128xbf16>, vector<16x128xf32> -> vector<16x128xf32>
    %c0_8 = arith.constant 0 : index
    %c0_9 = arith.constant 0 : index
    %12 = vector.load %arg5[%c0_8, %c0_9] : memref<1x128xf32, #tpu.memory_space<vmem>>, vector<1x128xf32>
    %13 = vector.broadcast %12 : vector<1x128xf32> to vector<16x128xf32>
    %14 = arith.addf %11, %13 : vector<16x128xf32>
    %cst_10 = arith.constant 1.000000e+00 : f32
    %15 = vector.broadcast %cst_10 : f32 to vector<16x128xf32>
    %16 = arith.mulf %14, %15 : vector<16x128xf32>
    %17 = arith.addf %0, %16 : vector<16x128xf32>
    %c0_11 = arith.constant 0 : index
    %c0_12 = arith.constant 0 : index
    %18 = vector.load %arg8[%c0_11, %c0_12] : memref<16x128xf32, #tpu.memory_space<vmem>>, vector<16x128xf32>
    tpu.vector_store %arg8[%c0_11, %c0_12], %17 {strides = array<i32>} : memref<16x128xf32, #tpu.memory_space<vmem>>, vector<16x128xf32>,
    %c0_13 = arith.constant 0 : index
    %c0_14 = arith.constant 0 : index
    %19 = vector.load %arg6[%c0_13, %c0_14] : memref<256x128xbf16, #tpu.memory_space<vmem>>, vector<256x128xbf16>
    %cst_15 = arith.constant dense<0.000000e+00> : vector<16x128xf32>
    %20 = tpu.matmul %9, %19, %cst_15 {dimension_numbers = #tpu.dot_dimension_numbers<[1], [0], [0], [1], [0, 0, 1, 1], [], []>} : vector<16x256xbf16>, vector<256x128xbf16>, vector<16x128xf32> -> vector<16x128xf32>
    %c0_16 = arith.constant 0 : index
    %c0_17 = arith.constant 0 : index
    %21 = vector.load %arg7[%c0_16, %c0_17] : memref<1x128xf32, #tpu.memory_space<vmem>>, vector<1x128xf32>
    %22 = vector.broadcast %21 : vector<1x128xf32> to vector<16x128xf32>
    %23 = arith.addf %20, %22 : vector<16x128xf32>
    %cst_18 = arith.constant 1.000000e+00 : f32
    %24 = vector.broadcast %cst_18 : f32 to vector<16x128xf32>
    %25 = arith.mulf %23, %24 : vector<16x128xf32>
    %26 = arith.addf %0, %25 : vector<16x128xf32>
    %c0_19 = arith.constant 0 : index
    %c0_20 = arith.constant 0 : index
    %27 = vector.load %arg9[%c0_19, %c0_20] : memref<16x128xf32, #tpu.memory_space<vmem>>, vector<16x128xf32>
    tpu.vector_store %arg9[%c0_19, %c0_20], %26 {strides = array<i32>} : memref<16x128xf32, #tpu.memory_space<vmem>>, vector<16x128xf32>,
    return
  }
  func.func @transform_0(%arg0: i32) -> (i32, i32) {
    %c0_i32 = arith.constant 0 : i32
    %c0_i32_0 = arith.constant 0 : i32
    return %arg0, %c0_i32 : i32, i32
  }
  func.func @transform_1(%arg0: i32) -> (i32, i32) {
    %c0_i32 = arith.constant 0 : i32
    %c0_i32_0 = arith.constant 0 : i32
    %c0_i32_1 = arith.constant 0 : i32
    return %c0_i32, %c0_i32_0 : i32, i32
  }
  func.func @transform_2(%arg0: i32) -> (i32, i32) {
    %c0_i32 = arith.constant 0 : i32
    %c0_i32_0 = arith.constant 0 : i32
    %c0_i32_1 = arith.constant 0 : i32
    return %c0_i32, %c0_i32_0 : i32, i32
  }
  func.func @transform_3(%arg0: i32) -> (i32, i32) {
    %c0_i32 = arith.constant 0 : i32
    %c0_i32_0 = arith.constant 0 : i32
    %c0_i32_1 = arith.constant 0 : i32
    return %c0_i32, %c0_i32_0 : i32, i32
  }
  func.func @transform_4(%arg0: i32) -> (i32, i32) {
    %c0_i32 = arith.constant 0 : i32
    %c0_i32_0 = arith.constant 0 : i32
    %c0_i32_1 = arith.constant 0 : i32
    return %c0_i32, %c0_i32_0 : i32, i32
  }
  func.func @transform_5(%arg0: i32) -> (i32, i32) {
    %c0_i32 = arith.constant 0 : i32
    %c0_i32_0 = arith.constant 0 : i32
    %c0_i32_1 = arith.constant 0 : i32
    return %c0_i32, %c0_i32_0 : i32, i32
  }
  func.func @transform_6(%arg0: i32) -> (i32, i32) {
    %c0_i32 = arith.constant 0 : i32
    %c0_i32_0 = arith.constant 0 : i32
    %c0_i32_1 = arith.constant 0 : i32
    return %c0_i32, %c0_i32_0 : i32, i32
  }
  func.func @transform_7(%arg0: i32) -> (i32, i32) {
    %c0_i32 = arith.constant 0 : i32
    %c0_i32_0 = arith.constant 0 : i32
    return %arg0, %c0_i32 : i32, i32
  }
  func.func @transform_8(%arg0: i32) -> (i32, i32) {
    %c0_i32 = arith.constant 0 : i32
    %c0_i32_0 = arith.constant 0 : i32
    return %arg0, %c0_i32 : i32, i32
  }
}

</mosaic_0001>

<llo_original>
// kernel: tpu_custom_call.1
$region0: #{tpu_custom_call.1}
  #allocation0 [shape = 'u32[]', space=smem, size = 0x4, offset = 0x4, fixed_abs, tag = 'smem constant byte address 0x4 - core index']
  #allocation1 [shape = 'u32[144,128]{1,0:T(1,128)}', space=vmem, size = 0x12000, scoped, tag = 'internal scratch']
  %s0 = inlined_call_operand.hbm [shape: f32[16,128], index: 0, kind: input, shape index: {}]
  %s1 = inlined_call_operand.hbm [shape: bf16[128,512], index: 1, kind: input, shape index: {}]
  %s2 = inlined_call_operand.vmem [shape: f32[1,512], index: 2, kind: input, shape index: {}]
  %s3 = inlined_call_operand.hbm [shape: bf16[256,128], index: 3, kind: input, shape index: {}]
  %s4 = inlined_call_operand.vmem [shape: f32[1,128], index: 4, kind: input, shape index: {}]
  %s5 = inlined_call_operand.hbm [shape: bf16[256,128], index: 5, kind: input, shape index: {}]
  %s6 = inlined_call_operand.vmem [shape: f32[1,128], index: 6, kind: input, shape index: {}]
  %s7 = inlined_call_operand.hbm [shape: f32[16,128], index: 7, kind: output, shape index: {0}]
  %s8 = inlined_call_operand.hbm [shape: f32[16,128], index: 8, kind: output, shape index: {1}]
  %9 = xla_tuple %s7, %s8
  %s10 = sld [smem:[#allocation0]]
  $region62: #{tpu_custom_call.1} parent=0
    _
  %s12 = ssub.s32 1, %s10
  %s13 = scalar_select 0, %s12, %s10
  $region1: #{tpu_custom_call.1} parent=0
    #allocation2 [shape = 'u8[8192]{0}', space=vmem, size = 0x2000, scoped, tag = 'input window, operand 0, single buffered']
    #allocation3 [shape = 's32[1]{0}', space=sflag, size = 0x4, scoped, tag = 'scoped memory for tpu_custom_call.1']
    #allocation4 [shape = 's32[1]{0}', space=sflag, size = 0x4, scoped, tag = 'scoped memory for tpu_custom_call.1']
    #allocation5 [shape = 'u8[131072]{0}', space=vmem, size = 0x20000, scoped, tag = 'input window, operand 1, single buffered']
    #allocation6 [shape = 's32[1]{0}', space=sflag, size = 0x4, scoped, tag = 'scoped memory for tpu_custom_call.1']
    #allocation7 [shape = 'u8[65536]{0}', space=vmem, size = 0x10000, scoped, tag = 'input window, operand 3, single buffered']
    #allocation8 [shape = 'u8[65536]{0}', space=vmem, size = 0x10000, scoped, tag = 'input window, operand 5, single buffered']
    #allocation9 [shape = 's32[1]{0}', space=sflag, size = 0x4, scoped, tag = 'scoped memory for tpu_custom_call.1']
    #allocation10 [shape = 'u8[8192]{0}', space=vmem, size = 0x2000, scoped, tag = 'output window, operand 0, single buffered']
    #allocation11 [shape = 'u8[8192]{0}', space=vmem, size = 0x2000, scoped, tag = 'output window, operand 1, single buffered']
    #allocation12 [shape = 's32[1]{0}', space=sflag, size = 0x4, scoped, tag = 'scoped memory for tpu_custom_call.1']
    %14 = vsyncpa [#allocation3], 0
    %15 = vsyncpa [#allocation6], 0
    %16 = vsyncpa [#allocation9], 0
    %17 = vsyncpa [#allocation4], 0
    %18 = vsyncpa [#allocation12], 0
    // Predicated region
    $region2: #{tpu_custom_call.1} parent=1 // pred_check
      _
    $region3: #{tpu_custom_call.1} parent=1 // pred_check_branch
      %20 = sbr.rel (0) target = $region5
    $region4: #{tpu_custom_call.1} parent=1 // pred_region
      %s22 = ssub.s32 256, 256
      %23 = vsyncadd [#allocation3], %s22
      %s24 = sshll.u32 [#allocation2], 4
      %s25 = int_to_ptr.vmem [resolvable:$true] %s24
      %30 = dma.hbm_to_vmem [thread:$0]  %s0, 256, %s25, [#allocation3], 128, 128, 8
    $region5: #{tpu_custom_call.1} parent=1 // pred_fallthru
      _
    // Predicated region
    $region6: #{tpu_custom_call.1} parent=1 // pred_check
      _
    $region7: #{tpu_custom_call.1} parent=1 // pred_check_branch
      %32 = sbr.rel (0) target = $region9
    $region8: #{tpu_custom_call.1} parent=1 // pred_region
      %s34 = ssub.s32 4096, 4096
      %35 = vsyncadd [#allocation6], %s34
      %s36 = sshll.u32 [#allocation5], 4
      %s37 = int_to_ptr.vmem [resolvable:$true] %s36
      %42 = dma.hbm_to_vmem [thread:$0]  %s1, 4096, %s37, [#allocation6], 256, 256, 16
    $region9: #{tpu_custom_call.1} parent=1 // pred_fallthru
      _
    // Predicated region
    $region10: #{tpu_custom_call.1} parent=1 // pred_check
      _
    $region11: #{tpu_custom_call.1} parent=1 // pred_check_branch
      %44 = sbr.rel (0) target = $region13
    $region12: #{tpu_custom_call.1} parent=1 // pred_region
      _
    $region13: #{tpu_custom_call.1} parent=1 // pred_fallthru
      _
    // Predicated region
    $region14: #{tpu_custom_call.1} parent=1 // pred_check
      _
    $region15: #{tpu_custom_call.1} parent=1 // pred_check_branch
      %46 = sbr.rel (0) target = $region17
    $region16: #{tpu_custom_call.1} parent=1 // pred_region
      %s48 = ssub.s32 2048, 2048
      %49 = vsyncadd [#allocation6], %s48
      %s50 = sshll.u32 [#allocation7], 4
      %s51 = int_to_ptr.vmem [resolvable:$true] %s50
      %56 = dma.hbm_to_vmem [thread:$0]  %s3, 2048, %s51, [#allocation6], 64, 64, 4
    $region17: #{tpu_custom_call.1} parent=1 // pred_fallthru
      _
    // Predicated region
    $region18: #{tpu_custom_call.1} parent=1 // pred_check
      _
    $region19: #{tpu_custom_call.1} parent=1 // pred_check_branch
      %58 = sbr.rel (0) target = $region21
    $region20: #{tpu_custom_call.1} parent=1 // pred_region
      _
    $region21: #{tpu_custom_call.1} parent=1 // pred_fallthru
      _
    // Predicated region
    $region22: #{tpu_custom_call.1} parent=1 // pred_check
      _
    $region23: #{tpu_custom_call.1} parent=1 // pred_check_branch
      %60 = sbr.rel (0) target = $region25
    $region24: #{tpu_custom_call.1} parent=1 // pred_region
      %s62 = ssub.s32 2048, 2048
      %63 = vsyncadd [#allocation9], %s62
      %s64 = sshll.u32 [#allocation8], 4
      %s65 = int_to_ptr.vmem [resolvable:$true] %s64
      %70 = dma.hbm_to_vmem [thread:$0]  %s5, 2048, %s65, [#allocation9], 64, 64, 4
    $region25: #{tpu_custom_call.1} parent=1 // pred_fallthru
      _
    // Predicated region
    $region26: #{tpu_custom_call.1} parent=1 // pred_check
      _
    $region27: #{tpu_custom_call.1} parent=1 // pred_check_branch
      %72 = sbr.rel (0) target = $region29
    $region28: #{tpu_custom_call.1} parent=1 // pred_region
      _
    $region29: #{tpu_custom_call.1} parent=1 // pred_fallthru
      _
    // Predicated region
    $region30: #{tpu_custom_call.1} parent=1 // pred_check
      _
    $region31: #{tpu_custom_call.1} parent=1 // pred_check_branch
      %74 = sbr.rel (0) target = $region33
    $region32: #{tpu_custom_call.1} parent=1 // pred_region
      %75 = dma.done [#allocation3], 256
    $region33: #{tpu_custom_call.1} parent=1 // pred_fallthru
      _
    // Predicated region
    $region34: #{tpu_custom_call.1} parent=1 // pred_check
      _
    $region35: #{tpu_custom_call.1} parent=1 // pred_check_branch
      %77 = sbr.rel (0) target = $region37
    $region36: #{tpu_custom_call.1} parent=1 // pred_region
      %78 = dma.done [#allocation6], 4096
    $region37: #{tpu_custom_call.1} parent=1 // pred_fallthru
      _
    // Predicated region
    $region38: #{tpu_custom_call.1} parent=1 // pred_check
      _
    $region39: #{tpu_custom_call.1} parent=1 // pred_check_branch
      %80 = sbr.rel (0) target = $region41
    $region40: #{tpu_custom_call.1} parent=1 // pred_region
      %81 = dma.done [#allocation6], 2048
    $region41: #{tpu_custom_call.1} parent=1 // pred_fallthru
      _
    // Predicated region
    $region42: #{tpu_custom_call.1} parent=1 // pred_check
      _
    $region43: #{tpu_custom_call.1} parent=1 // pred_check_branch
      %83 = sbr.rel (0) target = $region45
    $region44: #{tpu_custom_call.1} parent=1 // pred_region
      %84 = dma.done [#allocation9], 2048
    $region45: #{tpu_custom_call.1} parent=1 // pred_fallthru
      _
    %v86 = vld [vmem:[#allocation2] sm:$0xff]
    %v87 = vld [vmem:[#allocation2 + $0x8] sm:$0xff]
    %v88 = vpack.c.bf16 %v87, %v86
    %v89 = vld [vmem:[#allocation5] sm:$0xff]
    %v90 = vld [vmem:[#allocation5 + $0x8] sm:$0xff]
    %v91 = vld [vmem:[#allocation5 + $0x10] sm:$0xff]
    %v92 = vld [vmem:[#allocation5 + $0x18] sm:$0xff]
    %v93 = vld [vmem:[#allocation5 + $0x20] sm:$0xff]
    %v94 = vld [vmem:[#allocation5 + $0x28] sm:$0xff]
    %v95 = vld [vmem:[#allocation5 + $0x30] sm:$0xff]
    %v96 = vld [vmem:[#allocation5 + $0x38] sm:$0xff]
    %v97 = vld [vmem:[#allocation5 + $0x40] sm:$0xff]
    %v98 = vld [vmem:[#allocation5 + $0x48] sm:$0xff]
    %v99 = vld [vmem:[#allocation5 + $0x50] sm:$0xff]
    %v100 = vld [vmem:[#allocation5 + $0x58] sm:$0xff]
    %v101 = vld [vmem:[#allocation5 + $0x60] sm:$0xff]
    %v102 = vld [vmem:[#allocation5 + $0x68] sm:$0xff]
    %v103 = vld [vmem:[#allocation5 + $0x70] sm:$0xff]
    %v104 = vld [vmem:[#allocation5 + $0x78] sm:$0xff]
    %v105 = vld [vmem:[#allocation5 + $0x80] sm:$0xff]
    %v106 = vld [vmem:[#allocation5 + $0x88] sm:$0xff]
    %v107 = vld [vmem:[#allocation5 + $0x90] sm:$0xff]
    %v108 = vld [vmem:[#allocation5 + $0x98] sm:$0xff]
    %v109 = vld [vmem:[#allocation5 + $0xa0] sm:$0xff]
    %v110 = vld [vmem:[#allocation5 + $0xa8] sm:$0xff]
    %v111 = vld [vmem:[#allocation5 + $0xb0] sm:$0xff]
    %v112 = vld [vmem:[#allocation5 + $0xb8] sm:$0xff]
    %v113 = vld [vmem:[#allocation5 + $0xc0] sm:$0xff]
    %v114 = vld [vmem:[#allocation5 + $0xc8] sm:$0xff]
    %v115 = vld [vmem:[#allocation5 + $0xd0] sm:$0xff]
    %v116 = vld [vmem:[#allocation5 + $0xd8] sm:$0xff]
    %v117 = vld [vmem:[#allocation5 + $0xe0] sm:$0xff]
    %v118 = vld [vmem:[#allocation5 + $0xe8] sm:$0xff]
    %v119 = vld [vmem:[#allocation5 + $0xf0] sm:$0xff]
    %v120 = vld [vmem:[#allocation5 + $0xf8] sm:$0xff]
    %v121 = vld [vmem:[%s2] sm:$0xf]
    %v123 = vlaneseq
    %v124 = vshrl.u32 %v123, 7
    %v125 = vsub.s32 0, %v124
    %v126 = vrot.slane %v121, %v125
    %v127 = vlaneseq
    %v128 = vshrl.u32 %v127, 7
    %v129 = vsub.s32 1, %v128
    %v130 = vrot.slane %v121, %v129
    %v131 = vlaneseq
    %v132 = vshrl.u32 %v131, 7
    %v133 = vsub.s32 2, %v132
    %v134 = vrot.slane %v121, %v133
    %v135 = vlaneseq
    %v136 = vshrl.u32 %v135, 7
    %v137 = vsub.s32 3, %v136
    %v138 = vrot.slane %v121, %v137
    %v175 = vunpack.c.l.b16 %v89
    %v176 = vunpack.c.h.b16 %v89
    %v177 = vunpack.c.l.b16 %v90
    %v178 = vunpack.c.h.b16 %v90
    %v179 = vunpack.c.l.b16 %v91
    %v180 = vunpack.c.h.b16 %v91
    %v181 = vunpack.c.l.b16 %v92
    %v182 = vunpack.c.h.b16 %v92
    %v183 = vunpack.c.l.b16 %v93
    %v184 = vunpack.c.h.b16 %v93
    %v185 = vunpack.c.l.b16 %v94
    %v186 = vunpack.c.h.b16 %v94
    %v187 = vunpack.c.l.b16 %v95
    %v188 = vunpack.c.h.b16 %v95
    %v189 = vunpack.c.l.b16 %v96
    %v190 = vunpack.c.h.b16 %v96
    %v191 = vunpack.c.l.b16 %v97
    %v192 = vunpack.c.h.b16 %v97
    %v193 = vunpack.c.l.b16 %v98
    %v194 = vunpack.c.h.b16 %v98
    %v195 = vunpack.c.l.b16 %v99
    %v196 = vunpack.c.h.b16 %v99
    %v197 = vunpack.c.l.b16 %v100
    %v198 = vunpack.c.h.b16 %v100
    %v199 = vunpack.c.l.b16 %v101
    %v200 = vunpack.c.h.b16 %v101
    %v201 = vunpack.c.l.b16 %v102
    %v202 = vunpack.c.h.b16 %v102
    %v203 = vunpack.c.l.b16 %v103
    %v204 = vunpack.c.h.b16 %v103
    %v205 = vunpack.c.l.b16 %v104
    %v206 = vunpack.c.h.b16 %v104
    %v207 = vunpack.c.l.b16 %v105
    %v208 = vunpack.c.h.b16 %v105
    %v209 = vunpack.c.l.b16 %v106
    %v210 = vunpack.c.h.b16 %v106
    %v211 = vunpack.c.l.b16 %v107
    %v212 = vunpack.c.h.b16 %v107
    %v213 = vunpack.c.l.b16 %v108
    %v214 = vunpack.c.h.b16 %v108
    %v215 = vunpack.c.l.b16 %v109
    %v216 = vunpack.c.h.b16 %v109
    %v217 = vunpack.c.l.b16 %v110
    %v218 = vunpack.c.h.b16 %v110
    %v219 = vunpack.c.l.b16 %v111
    %v220 = vunpack.c.h.b16 %v111
    %v221 = vunpack.c.l.b16 %v112
    %v222 = vunpack.c.h.b16 %v112
    %v223 = vunpack.c.l.b16 %v113
    %v224 = vunpack.c.h.b16 %v113
    %v225 = vunpack.c.l.b16 %v114
    %v226 = vunpack.c.h.b16 %v114
    %v227 = vunpack.c.l.b16 %v115
    %v228 = vunpack.c.h.b16 %v115
    %v229 = vunpack.c.l.b16 %v116
    %v230 = vunpack.c.h.b16 %v116
    %v231 = vunpack.c.l.b16 %v117
    %v232 = vunpack.c.h.b16 %v117
    %v233 = vunpack.c.l.b16 %v118
    %v234 = vunpack.c.h.b16 %v118
    %v235 = vunpack.c.l.b16 %v119
    %v236 = vunpack.c.h.b16 %v119
    %v237 = vunpack.c.l.b16 %v120
    %v238 = vunpack.c.h.b16 %v120
    %v239 = vpack.c.b16 %v179, %v175
    %v240 = vpack.c.b16 %v180, %v176
    %v241 = vpack.c.b16 %v181, %v177
    %v242 = vpack.c.b16 %v182, %v178
    %v243 = vpack.c.b16 %v187, %v183
    %v244 = vpack.c.b16 %v188, %v184
    %v245 = vpack.c.b16 %v189, %v185
    %v246 = vpack.c.b16 %v190, %v186
    %v247 = vpack.c.b16 %v195, %v191
    %v248 = vpack.c.b16 %v196, %v192
    %v249 = vpack.c.b16 %v197, %v193
    %v250 = vpack.c.b16 %v198, %v194
    %v251 = vpack.c.b16 %v203, %v199
    %v252 = vpack.c.b16 %v204, %v200
    %v253 = vpack.c.b16 %v205, %v201
    %v254 = vpack.c.b16 %v206, %v202
    %v255 = vpack.c.b16 %v211, %v207
    %v256 = vpack.c.b16 %v212, %v208
    %v257 = vpack.c.b16 %v213, %v209
    %v258 = vpack.c.b16 %v214, %v210
    %v259 = vpack.c.b16 %v219, %v215
    %v260 = vpack.c.b16 %v220, %v216
    %v261 = vpack.c.b16 %v221, %v217
    %v262 = vpack.c.b16 %v222, %v218
    %v263 = vpack.c.b16 %v227, %v223
    %v264 = vpack.c.b16 %v228, %v224
    %v265 = vpack.c.b16 %v229, %v225
    %v266 = vpack.c.b16 %v230, %v226
    %v267 = vpack.c.b16 %v235, %v231
    %v268 = vpack.c.b16 %v236, %v232
    %v269 = vpack.c.b16 %v237, %v233
    %v270 = vpack.c.b16 %v238, %v234
    %303 = vmatprep.subr.bf16.mxu0 %v240
    %304 = vmatpush1.bf16.msra.mxu0 %v239
    %305 = vmatprep.subr.bf16.mxu0 %v244
    %306 = vmatpush1.bf16.msra.mxu0 %v243
    %307 = vmatprep.subr.bf16.mxu0 %v248
    %308 = vmatpush1.bf16.msra.mxu0 %v247
    %309 = vmatprep.subr.bf16.mxu0 %v252
    %310 = vmatpush1.bf16.msra.mxu0 %v251
    %311 = vmatprep.subr.bf16.mxu0 %v256
    %312 = vmatpush1.bf16.msra.mxu0 %v255
    %313 = vmatprep.subr.bf16.mxu0 %v260
    %314 = vmatpush1.bf16.msra.mxu0 %v259
    %315 = vmatprep.subr.bf16.mxu0 %v264
    %316 = vmatpush1.bf16.msra.mxu0 %v263
    %317 = vmatprep.subr.bf16.mxu0 %v268
    %318 = vmatpush1.bf16.msra.mxu0 %v267
    %319 = vmatprep.subr.bf16.mxu0 0
    %320 = vmatpush1.bf16.msra.mxu0 0
    %321 = vmatprep.subr.bf16.mxu0 0
    %322 = vmatpush1.bf16.msra.mxu0 0
    %323 = vmatprep.subr.bf16.mxu0 0
    %324 = vmatpush1.bf16.msra.mxu0 0
    %325 = vmatprep.subr.bf16.mxu0 0
    %326 = vmatpush1.bf16.msra.mxu0 0
    %327 = vmatprep.subr.bf16.mxu0 0
    %328 = vmatpush1.bf16.msra.mxu0 0
    %329 = vmatprep.subr.bf16.mxu0 0
    %330 = vmatpush1.bf16.msra.mxu0 0
    %331 = vmatprep.subr.bf16.mxu0 0
    %332 = vmatpush1.bf16.msra.mxu0 0
    %333 = vmatprep.subr.bf16.mxu0 0
    %334 = vmatpush1.bf16.msra.mxu0 0
    %335 = vmatprep.mubr.bf16.mxu0 0
    %336 = vmatmul.mubr.bf16.gmra.mrb[0].mxu0 %v88
    %v337 = vpop.f32.mrb[0].mxu0
    %v338 = vadd.f32 %v126, %v337
    %v339 = vpop.f32.mrb[0].mxu0
    %v340 = vadd.f32 %v130, %v339
    %v341 = vpop.f32.mrb[0].mxu0
    %v342 = vadd.f32 %v126, %v341
    %v343 = vpop.f32.mrb[0].mxu0
    %v344 = vadd.f32 %v130, %v343
    %345 = vdwg.mxu0
    %346 = vmatprep.subr.bf16.mxu0 %v242
    %347 = vmatpush1.bf16.msra.mxu0 %v241
    %348 = vmatprep.subr.bf16.mxu0 %v246
    %349 = vmatpush1.bf16.msra.mxu0 %v245
    %350 = vmatprep.subr.bf16.mxu0 %v250
    %351 = vmatpush1.bf16.msra.mxu0 %v249
    %352 = vmatprep.subr.bf16.mxu0 %v254
    %353 = vmatpush1.bf16.msra.mxu0 %v253
    %354 = vmatprep.subr.bf16.mxu0 %v258
    %355 = vmatpush1.bf16.msra.mxu0 %v257
    %356 = vmatprep.subr.bf16.mxu0 %v262
    %357 = vmatpush1.bf16.msra.mxu0 %v261
    %358 = vmatprep.subr.bf16.mxu0 %v266
    %359 = vmatpush1.bf16.msra.mxu0 %v265
    %360 = vmatprep.subr.bf16.mxu0 %v270
    %361 = vmatpush1.bf16.msra.mxu0 %v269
    %362 = vmatprep.subr.bf16.mxu0 0
    %363 = vmatpush1.bf16.msra.mxu0 0
    %364 = vmatprep.subr.bf16.mxu0 0
    %365 = vmatpush1.bf16.msra.mxu0 0
    %366 = vmatprep.subr.bf16.mxu0 0
    %367 = vmatpush1.bf16.msra.mxu0 0
    %368 = vmatprep.subr.bf16.mxu0 0
    %369 = vmatpush1.bf16.msra.mxu0 0
    %370 = vmatprep.subr.bf16.mxu0 0
    %371 = vmatpush1.bf16.msra.mxu0 0
    %372 = vmatprep.subr.bf16.mxu0 0
    %373 = vmatpush1.bf16.msra.mxu0 0
    %374 = vmatprep.subr.bf16.mxu0 0
    %375 = vmatpush1.bf16.msra.mxu0 0
    %376 = vmatprep.subr.bf16.mxu0 0
    %377 = vmatpush1.bf16.msra.mxu0 0
    %378 = vmatprep.mubr.bf16.mxu0 0
    %379 = vmatmul.mubr.bf16.gmra.mrb[0].mxu0 %v88
    %v380 = vpop.f32.mrb[0].mxu0
    %v381 = vadd.f32 %v134, %v380
    %v382 = vpop.f32.mrb[0].mxu0
    %v383 = vadd.f32 %v138, %v382
    %v384 = vpop.f32.mrb[0].mxu0
    %v385 = vadd.f32 %v134, %v384
    %v386 = vpop.f32.mrb[0].mxu0
    %v387 = vadd.f32 %v138, %v386
    %388 = vdwg.mxu0
    %v389 = vpack.c.bf16 %v342, %v338
    %v390 = vpack.c.bf16 %v344, %v340
    %v391 = vpack.c.bf16 %v385, %v381
    %v392 = vpack.c.bf16 %v387, %v383
    %v393 = vld [vmem:[#allocation7] sm:$0xf]
    %v394 = vld [vmem:[#allocation7 + $0x4] sm:$0xf]
    %v395 = vld [vmem:[#allocation7 + $0x8] sm:$0xf]
    %v396 = vld [vmem:[#allocation7 + $0xc] sm:$0xf]
    %v397 = vld [vmem:[#allocation7 + $0x10] sm:$0xf]
    %v398 = vld [vmem:[#allocation7 + $0x14] sm:$0xf]
    %v399 = vld [vmem:[#allocation7 + $0x18] sm:$0xf]
    %v400 = vld [vmem:[#allocation7 + $0x1c] sm:$0xf]
    %v401 = vld [vmem:[#allocation7 + $0x20] sm:$0xf]
    %v402 = vld [vmem:[#allocation7 + $0x24] sm:$0xf]
    %v403 = vld [vmem:[#allocation7 + $0x28] sm:$0xf]
    %v404 = vld [vmem:[#allocation7 + $0x2c] sm:$0xf]
    %v405 = vld [vmem:[#allocation7 + $0x30] sm:$0xf]
    %v406 = vld [vmem:[#allocation7 + $0x34] sm:$0xf]
    %v407 = vld [vmem:[#allocation7 + $0x38] sm:$0xf]
    %v408 = vld [vmem:[#allocation7 + $0x3c] sm:$0xf]
    %v409 = vld [vmem:[#allocation7 + $0x40] sm:$0xf]
    %v410 = vld [vmem:[#allocation7 + $0x44] sm:$0xf]
    %v411 = vld [vmem:[#allocation7 + $0x48] sm:$0xf]
    %v412 = vld [vmem:[#allocation7 + $0x4c] sm:$0xf]
    %v413 = vld [vmem:[#allocation7 + $0x50] sm:$0xf]
    %v414 = vld [vmem:[#allocation7 + $0x54] sm:$0xf]
    %v415 = vld [vmem:[#allocation7 + $0x58] sm:$0xf]
    %v416 = vld [vmem:[#allocation7 + $0x5c] sm:$0xf]
    %v417 = vld [vmem:[#allocation7 + $0x60] sm:$0xf]
    %v418 = vld [vmem:[#allocation7 + $0x64] sm:$0xf]
    %v419 = vld [vmem:[#allocation7 + $0x68] sm:$0xf]
    %v420 = vld [vmem:[#allocation7 + $0x6c] sm:$0xf]
    %v421 = vld [vmem:[#allocation7 + $0x70] sm:$0xf]
    %v422 = vld [vmem:[#allocation7 + $0x74] sm:$0xf]
    %v423 = vld [vmem:[#allocation7 + $0x78] sm:$0xf]
    %v424 = vld [vmem:[#allocation7 + $0x7c] sm:$0xf]
    %v425 = vld [vmem:[%s4] sm:$0x1]
    %v427 = vlaneseq
    %v428 = vshrl.u32 %v427, 7
    %v429 = vsub.s32 0, %v428
    %v430 = vrot.slane %v425, %v429
    %v464 = vunpack.c.l.b16 %v393
    %v465 = vunpack.c.l.b16 %v394
    %v466 = vunpack.c.l.b16 %v395
    %v467 = vunpack.c.l.b16 %v396
    %v468 = vunpack.c.l.b16 %v397
    %v469 = vunpack.c.l.b16 %v398
    %v470 = vunpack.c.l.b16 %v399
    %v471 = vunpack.c.l.b16 %v400
    %v472 = vunpack.c.l.b16 %v401
    %v473 = vunpack.c.l.b16 %v402
    %v474 = vunpack.c.l.b16 %v403
    %v475 = vunpack.c.l.b16 %v404
    %v476 = vunpack.c.l.b16 %v405
    %v477 = vunpack.c.l.b16 %v406
    %v478 = vunpack.c.l.b16 %v407
    %v479 = vunpack.c.l.b16 %v408
    %v480 = vunpack.c.l.b16 %v409
    %v481 = vunpack.c.l.b16 %v410
    %v482 = vunpack.c.l.b16 %v411
    %v483 = vunpack.c.l.b16 %v412
    %v484 = vunpack.c.l.b16 %v413
    %v485 = vunpack.c.l.b16 %v414
    %v486 = vunpack.c.l.b16 %v415
    %v487 = vunpack.c.l.b16 %v416
    %v488 = vunpack.c.l.b16 %v417
    %v489 = vunpack.c.l.b16 %v418
    %v490 = vunpack.c.l.b16 %v419
    %v491 = vunpack.c.l.b16 %v420
    %v492 = vunpack.c.l.b16 %v421
    %v493 = vunpack.c.l.b16 %v422
    %v494 = vunpack.c.l.b16 %v423
    %v495 = vunpack.c.l.b16 %v424
    %v496 = vpack.c.b16 %v465, %v464
    %v497 = vpack.c.b16 %v467, %v466
    %v498 = vpack.c.b16 %v469, %v468
    %v499 = vpack.c.b16 %v471, %v470
    %v500 = vpack.c.b16 %v473, %v472
    %v501 = vpack.c.b16 %v475, %v474
    %v502 = vpack.c.b16 %v477, %v476
    %v503 = vpack.c.b16 %v479, %v478
    %v504 = vpack.c.b16 %v481, %v480
    %v505 = vpack.c.b16 %v483, %v482
    %v506 = vpack.c.b16 %v485, %v484
    %v507 = vpack.c.b16 %v487, %v486
    %v508 = vpack.c.b16 %v489, %v488
    %v509 = vpack.c.b16 %v491, %v490
    %v510 = vpack.c.b16 %v493, %v492
    %v511 = vpack.c.b16 %v495, %v494
    %528 = vmatprep.subr.bf16.mxu0 0
    %529 = vmatpush1.bf16.msra.mxu0 %v496
    %530 = vmatprep.subr.bf16.mxu0 0
    %531 = vmatpush1.bf16.msra.mxu0 %v497
    %532 = vmatprep.subr.bf16.mxu0 0
    %533 = vmatpush1.bf16.msra.mxu0 %v498
    %534 = vmatprep.subr.bf16.mxu0 0
    %535 = vmatpush1.bf16.msra.mxu0 %v499
    %536 = vmatprep.subr.bf16.mxu0 0
    %537 = vmatpush1.bf16.msra.mxu0 %v500
    %538 = vmatprep.subr.bf16.mxu0 0
    %539 = vmatpush1.bf16.msra.mxu0 %v501
    %540 = vmatprep.subr.bf16.mxu0 0
    %541 = vmatpush1.bf16.msra.mxu0 %v502
    %542 = vmatprep.subr.bf16.mxu0 0
    %543 = vmatpush1.bf16.msra.mxu0 %v503
    %544 = vmatprep.subr.bf16.mxu0 0
    %545 = vmatpush1.bf16.msra.mxu0 %v504
    %546 = vmatprep.subr.bf16.mxu0 0
    %547 = vmatpush1.bf16.msra.mxu0 %v505
    %548 = vmatprep.subr.bf16.mxu0 0
    %549 = vmatpush1.bf16.msra.mxu0 %v506
    %550 = vmatprep.subr.bf16.mxu0 0
    %551 = vmatpush1.bf16.msra.mxu0 %v507
    %552 = vmatprep.subr.bf16.mxu0 0
    %553 = vmatpush1.bf16.msra.mxu0 %v508
    %554 = vmatprep.subr.bf16.mxu0 0
    %555 = vmatpush1.bf16.msra.mxu0 %v509
    %556 = vmatprep.subr.bf16.mxu0 0
    %557 = vmatpush1.bf16.msra.mxu0 %v510
    %558 = vmatprep.subr.bf16.mxu0 0
    %559 = vmatpush1.bf16.msra.mxu0 %v511
    %560 = vmatprep.mubr.bf16.mxu0 %v390
    %561 = vmatmul.mubr.bf16.gmra.mrb[0].mxu0 %v389
    %v562 = vpop.f32.mrb[0].mxu0
    %v563 = vadd.f32 %v430, %v562
    %v564 = vpop.f32.mrb[0].mxu0
    %v565 = vpop.f32.mrb[0].mxu0
    %v566 = vadd.f32 %v430, %v565
    %v567 = vpop.f32.mrb[0].mxu0
    %568 = vdwg.mxu0
    %v569 = vadd.f32 %v86, %v563
    %v570 = vadd.f32 %v87, %v566
    %571 = vst [vmem:[#allocation10] sm:$0xff] %v569
    %572 = vst [vmem:[#allocation10 + $0x8] sm:$0xff] %v570
    %v573 = vld [vmem:[#allocation8] sm:$0xf]
    %v574 = vld [vmem:[#allocation8 + $0x4] sm:$0xf]
    %v575 = vld [vmem:[#allocation8 + $0x8] sm:$0xf]
    %v576 = vld [vmem:[#allocation8 + $0xc] sm:$0xf]
    %v577 = vld [vmem:[#allocation8 + $0x10] sm:$0xf]
    %v578 = vld [vmem:[#allocation8 + $0x14] sm:$0xf]
    %v579 = vld [vmem:[#allocation8 + $0x18] sm:$0xf]
    %v580 = vld [vmem:[#allocation8 + $0x1c] sm:$0xf]
    %v581 = vld [vmem:[#allocation8 + $0x20] sm:$0xf]
    %v582 = vld [vmem:[#allocation8 + $0x24] sm:$0xf]
    %v583 = vld [vmem:[#allocation8 + $0x28] sm:$0xf]
    %v584 = vld [vmem:[#allocation8 + $0x2c] sm:$0xf]
    %v585 = vld [vmem:[#allocation8 + $0x30] sm:$0xf]
    %v586 = vld [vmem:[#allocation8 + $0x34] sm:$0xf]
    %v587 = vld [vmem:[#allocation8 + $0x38] sm:$0xf]
    %v588 = vld [vmem:[#allocation8 + $0x3c] sm:$0xf]
    %v589 = vld [vmem:[#allocation8 + $0x40] sm:$0xf]
    %v590 = vld [vmem:[#allocation8 + $0x44] sm:$0xf]
    %v591 = vld [vmem:[#allocation8 + $0x48] sm:$0xf]
    %v592 = vld [vmem:[#allocation8 + $0x4c] sm:$0xf]
    %v593 = vld [vmem:[#allocation8 + $0x50] sm:$0xf]
    %v594 = vld [vmem:[#allocation8 + $0x54] sm:$0xf]
    %v595 = vld [vmem:[#allocation8 + $0x58] sm:$0xf]
    %v596 = vld [vmem:[#allocation8 + $0x5c] sm:$0xf]
    %v597 = vld [vmem:[#allocation8 + $0x60] sm:$0xf]
    %v598 = vld [vmem:[#allocation8 + $0x64] sm:$0xf]
    %v599 = vld [vmem:[#allocation8 + $0x68] sm:$0xf]
    %v600 = vld [vmem:[#allocation8 + $0x6c] sm:$0xf]
    %v601 = vld [vmem:[#allocation8 + $0x70] sm:$0xf]
    %v602 = vld [vmem:[#allocation8 + $0x74] sm:$0xf]
    %v603 = vld [vmem:[#allocation8 + $0x78] sm:$0xf]
    %v604 = vld [vmem:[#allocation8 + $0x7c] sm:$0xf]
    %v605 = vld [vmem:[%s6] sm:$0x1]
    %v607 = vlaneseq
    %v608 = vshrl.u32 %v607, 7
    %v609 = vsub.s32 0, %v608
    %v610 = vrot.slane %v605, %v609
    %v644 = vunpack.c.l.b16 %v573
    %v645 = vunpack.c.l.b16 %v574
    %v646 = vunpack.c.l.b16 %v575
    %v647 = vunpack.c.l.b16 %v576
    %v648 = vunpack.c.l.b16 %v577
    %v649 = vunpack.c.l.b16 %v578
    %v650 = vunpack.c.l.b16 %v579
    %v651 = vunpack.c.l.b16 %v580
    %v652 = vunpack.c.l.b16 %v581
    %v653 = vunpack.c.l.b16 %v582
    %v654 = vunpack.c.l.b16 %v583
    %v655 = vunpack.c.l.b16 %v584
    %v656 = vunpack.c.l.b16 %v585
    %v657 = vunpack.c.l.b16 %v586
    %v658 = vunpack.c.l.b16 %v587
    %v659 = vunpack.c.l.b16 %v588
    %v660 = vunpack.c.l.b16 %v589
    %v661 = vunpack.c.l.b16 %v590
    %v662 = vunpack.c.l.b16 %v591
    %v663 = vunpack.c.l.b16 %v592
    %v664 = vunpack.c.l.b16 %v593
    %v665 = vunpack.c.l.b16 %v594
    %v666 = vunpack.c.l.b16 %v595
    %v667 = vunpack.c.l.b16 %v596
    %v668 = vunpack.c.l.b16 %v597
    %v669 = vunpack.c.l.b16 %v598
    %v670 = vunpack.c.l.b16 %v599
    %v671 = vunpack.c.l.b16 %v600
    %v672 = vunpack.c.l.b16 %v601
    %v673 = vunpack.c.l.b16 %v602
    %v674 = vunpack.c.l.b16 %v603
    %v675 = vunpack.c.l.b16 %v604
    %v676 = vpack.c.b16 %v645, %v644
    %v677 = vpack.c.b16 %v647, %v646
    %v678 = vpack.c.b16 %v649, %v648
    %v679 = vpack.c.b16 %v651, %v650
    %v680 = vpack.c.b16 %v653, %v652
    %v681 = vpack.c.b16 %v655, %v654
    %v682 = vpack.c.b16 %v657, %v656
    %v683 = vpack.c.b16 %v659, %v658
    %v684 = vpack.c.b16 %v661, %v660
    %v685 = vpack.c.b16 %v663, %v662
    %v686 = vpack.c.b16 %v665, %v664
    %v687 = vpack.c.b16 %v667, %v666
    %v688 = vpack.c.b16 %v669, %v668
    %v689 = vpack.c.b16 %v671, %v670
    %v690 = vpack.c.b16 %v673, %v672
    %v691 = vpack.c.b16 %v675, %v674
    %708 = vmatprep.subr.bf16.mxu0 0
    %709 = vmatpush1.bf16.msra.mxu0 %v676
    %710 = vmatprep.subr.bf16.mxu0 0
    %711 = vmatpush1.bf16.msra.mxu0 %v677
    %712 = vmatprep.subr.bf16.mxu0 0
    %713 = vmatpush1.bf16.msra.mxu0 %v678
    %714 = vmatprep.subr.bf16.mxu0 0
    %715 = vmatpush1.bf16.msra.mxu0 %v679
    %716 = vmatprep.subr.bf16.mxu0 0
    %717 = vmatpush1.bf16.msra.mxu0 %v680
    %718 = vmatprep.subr.bf16.mxu0 0
    %719 = vmatpush1.bf16.msra.mxu0 %v681
    %720 = vmatprep.subr.bf16.mxu0 0
    %721 = vmatpush1.bf16.msra.mxu0 %v682
    %722 = vmatprep.subr.bf16.mxu0 0
    %723 = vmatpush1.bf16.msra.mxu0 %v683
    %724 = vmatprep.subr.bf16.mxu0 0
    %725 = vmatpush1.bf16.msra.mxu0 %v684
    %726 = vmatprep.subr.bf16.mxu0 0
    %727 = vmatpush1.bf16.msra.mxu0 %v685
    %728 = vmatprep.subr.bf16.mxu0 0
    %729 = vmatpush1.bf16.msra.mxu0 %v686
    %730 = vmatprep.subr.bf16.mxu0 0
    %731 = vmatpush1.bf16.msra.mxu0 %v687
    %732 = vmatprep.subr.bf16.mxu0 0
    %733 = vmatpush1.bf16.msra.mxu0 %v688
    %734 = vmatprep.subr.bf16.mxu0 0
    %735 = vmatpush1.bf16.msra.mxu0 %v689
    %736 = vmatprep.subr.bf16.mxu0 0
    %737 = vmatpush1.bf16.msra.mxu0 %v690
    %738 = vmatprep.subr.bf16.mxu0 0
    %739 = vmatpush1.bf16.msra.mxu0 %v691
    %740 = vmatprep.mubr.bf16.mxu0 %v392
    %741 = vmatmul.mubr.bf16.gmra.mrb[0].mxu0 %v391
    %v742 = vpop.f32.mrb[0].mxu0
    %v743 = vadd.f32 %v610, %v742
    %v744 = vpop.f32.mrb[0].mxu0
    %v745 = vpop.f32.mrb[0].mxu0
    %v746 = vadd.f32 %v610, %v745
    %v747 = vpop.f32.mrb[0].mxu0
    %748 = vdwg.mxu0
    %v749 = vadd.f32 %v86, %v743
    %v750 = vadd.f32 %v87, %v746
    %751 = vst [vmem:[#allocation11] sm:$0xff] %v749
    %752 = vst [vmem:[#allocation11 + $0x8] sm:$0xff] %v750
    // Predicated region
    $region46: #{tpu_custom_call.1} parent=1 // pred_check
      _
    $region47: #{tpu_custom_call.1} parent=1 // pred_check_branch
      %754 = sbr.rel (0) target = $region49
    $region48: #{tpu_custom_call.1} parent=1 // pred_region
      %s756 = ssub.s32 256, 256
      %757 = vsyncadd [#allocation4], %s756
      %s758 = sshll.u32 [#allocation10], 4
      %s759 = int_to_ptr.vmem [resolvable:$true] %s758
      %764 = dma.vmem_to_hbm [thread:$0]  %s759, 256, %s7, [#allocation4], 128, 128, 8
    $region49: #{tpu_custom_call.1} parent=1 // pred_fallthru
      _
    // Predicated region
    $region50: #{tpu_custom_call.1} parent=1 // pred_check
      _
    $region51: #{tpu_custom_call.1} parent=1 // pred_check_branch
      %766 = sbr.rel (0) target = $region53
    $region52: #{tpu_custom_call.1} parent=1 // pred_region
      %s768 = ssub.s32 256, 256
      %769 = vsyncadd [#allocation12], %s768
      %s770 = sshll.u32 [#allocation11], 4
      %s771 = int_to_ptr.vmem [resolvable:$true] %s770
      %776 = dma.vmem_to_hbm [thread:$0]  %s771, 256, %s8, [#allocation12], 128, 128, 8
    $region53: #{tpu_custom_call.1} parent=1 // pred_fallthru
      _
    // Predicated region
    $region54: #{tpu_custom_call.1} parent=1 // pred_check
      _
    $region55: #{tpu_custom_call.1} parent=1 // pred_check_branch
      %778 = sbr.rel (0) target = $region57
    $region56: #{tpu_custom_call.1} parent=1 // pred_region
      %779 = dma.done [#allocation4], 256
    $region57: #{tpu_custom_call.1} parent=1 // pred_fallthru
      _
    // Predicated region
    $region58: #{tpu_custom_call.1} parent=1 // pred_check
      _
    $region59: #{tpu_custom_call.1} parent=1 // pred_check_branch
      %781 = sbr.rel (0) target = $region61
    $region60: #{tpu_custom_call.1} parent=1 // pred_region
      %782 = dma.done [#allocation12], 256
    $region61: #{tpu_custom_call.1} parent=1 // pred_fallthru
      _
    %783 = vsyncpa [#allocation3], 1
    %784 = vsyncpa [#allocation6], 1
    %785 = vsyncpa [#allocation9], 1
    %786 = vsyncpa [#allocation4], 1
    %787 = vsyncpa [#allocation12], 1

// kernel: tpu_custom_call.1
$region0: #{tpu_custom_call.1}
  #allocation0 [shape = 'u32[]', space=smem, size = 0x4, offset = 0x4, fixed_abs, tag = 'smem constant byte address 0x4 - core index']
  #allocation1 [shape = 'u32[144,128]{1,0:T(1,128)}', space=vmem, size = 0x12000, scoped, tag = 'internal scratch']
  %s0 = inlined_call_operand.hbm [shape: f32[16,128], index: 0, kind: input, shape index: {}]
  %s1 = inlined_call_operand.hbm [shape: bf16[128,512], index: 1, kind: input, shape index: {}]
  %s2 = inlined_call_operand.vmem [shape: f32[1,512], index: 2, kind: input, shape index: {}]
  %s3 = inlined_call_operand.hbm [shape: bf16[256,128], index: 3, kind: input, shape index: {}]
  %s4 = inlined_call_operand.vmem [shape: f32[1,128], index: 4, kind: input, shape index: {}]
  %s5 = inlined_call_operand.hbm [shape: bf16[256,128], index: 5, kind: input, shape index: {}]
  %s6 = inlined_call_operand.vmem [shape: f32[1,128], index: 6, kind: input, shape index: {}]
  %s7 = inlined_call_operand.hbm [shape: f32[16,128], index: 7, kind: output, shape index: {0}]
  %s8 = inlined_call_operand.hbm [shape: f32[16,128], index: 8, kind: output, shape index: {1}]
  %9 = xla_tuple %s7, %s8
  %s10 = sld [smem:[#allocation0]]
  $region62: #{tpu_custom_call.1} parent=0
    _
  %s12 = ssub.s32 1, %s10
  %s13 = scalar_select 0, %s12, %s10
  $region1: #{tpu_custom_call.1} parent=0
    #allocation2 [shape = 'u8[8192]{0}', space=vmem, size = 0x2000, scoped, tag = 'input window, operand 0, single buffered']
    #allocation3 [shape = 's32[1]{0}', space=sflag, size = 0x4, scoped, tag = 'scoped memory for tpu_custom_call.1']
    #allocation4 [shape = 's32[1]{0}', space=sflag, size = 0x4, scoped, tag = 'scoped memory for tpu_custom_call.1']
    #allocation5 [shape = 'u8[131072]{0}', space=vmem, size = 0x20000, scoped, tag = 'input window, operand 1, single buffered']
    #allocation6 [shape = 's32[1]{0}', space=sflag, size = 0x4, scoped, tag = 'scoped memory for tpu_custom_call.1']
    #allocation7 [shape = 'u8[65536]{0}', space=vmem, size = 0x10000, scoped, tag = 'input window, operand 3, single buffered']
    #allocation8 [shape = 'u8[65536]{0}', space=vmem, size = 0x10000, scoped, tag = 'input window, operand 5, single buffered']
    #allocation9 [shape = 's32[1]{0}', space=sflag, size = 0x4, scoped, tag = 'scoped memory for tpu_custom_call.1']
    #allocation10 [shape = 'u8[8192]{0}', space=vmem, size = 0x2000, scoped, tag = 'output window, operand 0, single buffered']
    #allocation11 [shape = 'u8[8192]{0}', space=vmem, size = 0x2000, scoped, tag = 'output window, operand 1, single buffered']
    #allocation12 [shape = 's32[1]{0}', space=sflag, size = 0x4, scoped, tag = 'scoped memory for tpu_custom_call.1']
    %14 = vsyncpa [#allocation3], 0
    %15 = vsyncpa [#allocation6], 0
    %16 = vsyncpa [#allocation9], 0
    %17 = vsyncpa [#allocation4], 0
    %18 = vsyncpa [#allocation12], 0
    // Predicated region
    $region2: #{tpu_custom_call.1} parent=1 // pred_check
      _
    $region3: #{tpu_custom_call.1} parent=1 // pred_check_branch
      %20 = sbr.rel (0) target = $region5
    $region4: #{tpu_custom_call.1} parent=1 // pred_region
      %s22 = ssub.s32 256, 256
      %23 = vsyncadd [#allocation3], %s22
      %s24 = sshll.u32 [#allocation2], 4
      %s25 = int_to_ptr.vmem [resolvable:$true] %s24
      %30 = dma.hbm_to_vmem [thread:$0]  %s0, 256, %s25, [#allocation3], 128, 128, 8
    $region5: #{tpu_custom_call.1} parent=1 // pred_fallthru
      _
    // Predicated region
    $region6: #{tpu_custom_call.1} parent=1 // pred_check
      _
    $region7: #{tpu_custom_call.1} parent=1 // pred_check_branch
      %32 = sbr.rel (0) target = $region9
    $region8: #{tpu_custom_call.1} parent=1 // pred_region
      %s34 = ssub.s32 4096, 4096
      %35 = vsyncadd [#allocation6], %s34
      %s36 = sshll.u32 [#allocation5], 4
      %s37 = int_to_ptr.vmem [resolvable:$true] %s36
      %42 = dma.hbm_to_vmem [thread:$0]  %s1, 4096, %s37, [#allocation6], 256, 256, 16
    $region9: #{tpu_custom_call.1} parent=1 // pred_fallthru
      _
    // Predicated region
    $region10: #{tpu_custom_call.1} parent=1 // pred_check
      _
    $region11: #{tpu_custom_call.1} parent=1 // pred_check_branch
      %44 = sbr.rel (0) target = $region13
    $region12: #{tpu_custom_call.1} parent=1 // pred_region
      _
    $region13: #{tpu_custom_call.1} parent=1 // pred_fallthru
      _
    // Predicated region
    $region14: #{tpu_custom_call.1} parent=1 // pred_check
      _
    $region15: #{tpu_custom_call.1} parent=1 // pred_check_branch
      %46 = sbr.rel (0) target = $region17
    $region16: #{tpu_custom_call.1} parent=1 // pred_region
      %s48 = ssub.s32 2048, 2048
      %49 = vsyncadd [#allocation6], %s48
      %s50 = sshll.u32 [#allocation7], 4
      %s51 = int_to_ptr.vmem [resolvable:$true] %s50
      %56 = dma.hbm_to_vmem [thread:$0]  %s3, 2048, %s51, [#allocation6], 64, 64, 4
    $region17: #{tpu_custom_call.1} parent=1 // pred_fallthru
      _
    // Predicated region
    $region18: #{tpu_custom_call.1} parent=1 // pred_check
      _
    $region19: #{tpu_custom_call.1} parent=1 // pred_check_branch
      %58 = sbr.rel (0) target = $region21
    $region20: #{tpu_custom_call.1} parent=1 // pred_region
      _
    $region21: #{tpu_custom_call.1} parent=1 // pred_fallthru
      _
    // Predicated region
    $region22: #{tpu_custom_call.1} parent=1 // pred_check
      _
    $region23: #{tpu_custom_call.1} parent=1 // pred_check_branch
      %60 = sbr.rel (0) target = $region25
    $region24: #{tpu_custom_call.1} parent=1 // pred_region
      %s62 = ssub.s32 2048, 2048
      %63 = vsyncadd [#allocation9], %s62
      %s64 = sshll.u32 [#allocation8], 4
      %s65 = int_to_ptr.vmem [resolvable:$true] %s64
      %70 = dma.hbm_to_vmem [thread:$0]  %s5, 2048, %s65, [#allocation9], 64, 64, 4
    $region25: #{tpu_custom_call.1} parent=1 // pred_fallthru
      _
    // Predicated region
    $region26: #{tpu_custom_call.1} parent=1 // pred_check
      _
    $region27: #{tpu_custom_call.1} parent=1 // pred_check_branch
      %72 = sbr.rel (0) target = $region29
    $region28: #{tpu_custom_call.1} parent=1 // pred_region
      _
    $region29: #{tpu_custom_call.1} parent=1 // pred_fallthru
      _
    // Predicated region
    $region30: #{tpu_custom_call.1} parent=1 // pred_check
      _
    $region31: #{tpu_custom_call.1} parent=1 // pred_check_branch
      %74 = sbr.rel (0) target = $region33
    $region32: #{tpu_custom_call.1} parent=1 // pred_region
      %75 = dma.done [#allocation3], 256
    $region33: #{tpu_custom_call.1} parent=1 // pred_fallthru
      _
    // Predicated region
    $region34: #{tpu_custom_call.1} parent=1 // pred_check
      _
    $region35: #{tpu_custom_call.1} parent=1 // pred_check_branch
      %77 = sbr.rel (0) target = $region37
    $region36: #{tpu_custom_call.1} parent=1 // pred_region
      %78 = dma.done [#allocation6], 4096
    $region37: #{tpu_custom_call.1} parent=1 // pred_fallthru
      _
    // Predicated region
    $region38: #{tpu_custom_call.1} parent=1 // pred_check
      _
    $region39: #{tpu_custom_call.1} parent=1 // pred_check_branch
      %80 = sbr.rel (0) target = $region41
    $region40: #{tpu_custom_call.1} parent=1 // pred_region
      %81 = dma.done [#allocation6], 2048
    $region41: #{tpu_custom_call.1} parent=1 // pred_fallthru
      _
    // Predicated region
    $region42: #{tpu_custom_call.1} parent=1 // pred_check
      _
    $region43: #{tpu_custom_call.1} parent=1 // pred_check_branch
      %83 = sbr.rel (0) target = $region45
    $region44: #{tpu_custom_call.1} parent=1 // pred_region
      %84 = dma.done [#allocation9], 2048
    $region45: #{tpu_custom_call.1} parent=1 // pred_fallthru
      _
    %v86 = vld [vmem:[#allocation2] sm:$0xff]
    %v87 = vld [vmem:[#allocation2 + $0x8] sm:$0xff]
    %v88 = vpack.c.bf16 %v87, %v86
    %v89 = vld [vmem:[#allocation5] sm:$0xff]
    %v90 = vld [vmem:[#allocation5 + $0x8] sm:$0xff]
    %v91 = vld [vmem:[#allocation5 + $0x10] sm:$0xff]
    %v92 = vld [vmem:[#allocation5 + $0x18] sm:$0xff]
    %v93 = vld [vmem:[#allocation5 + $0x20] sm:$0xff]
    %v94 = vld [vmem:[#allocation5 + $0x28] sm:$0xff]
    %v95 = vld [vmem:[#allocation5 + $0x30] sm:$0xff]
    %v96 = vld [vmem:[#allocation5 + $0x38] sm:$0xff]
    %v97 = vld [vmem:[#allocation5 + $0x40] sm:$0xff]
    %v98 = vld [vmem:[#allocation5 + $0x48] sm:$0xff]
    %v99 = vld [vmem:[#allocation5 + $0x50] sm:$0xff]
    %v100 = vld [vmem:[#allocation5 + $0x58] sm:$0xff]
    %v101 = vld [vmem:[#allocation5 + $0x60] sm:$0xff]
    %v102 = vld [vmem:[#allocation5 + $0x68] sm:$0xff]
    %v103 = vld [vmem:[#allocation5 + $0x70] sm:$0xff]
    %v104 = vld [vmem:[#allocation5 + $0x78] sm:$0xff]
    %v105 = vld [vmem:[#allocation5 + $0x80] sm:$0xff]
    %v106 = vld [vmem:[#allocation5 + $0x88] sm:$0xff]
    %v107 = vld [vmem:[#allocation5 + $0x90] sm:$0xff]
    %v108 = vld [vmem:[#allocation5 + $0x98] sm:$0xff]
    %v109 = vld [vmem:[#allocation5 + $0xa0] sm:$0xff]
    %v110 = vld [vmem:[#allocation5 + $0xa8] sm:$0xff]
    %v111 = vld [vmem:[#allocation5 + $0xb0] sm:$0xff]
    %v112 = vld [vmem:[#allocation5 + $0xb8] sm:$0xff]
    %v113 = vld [vmem:[#allocation5 + $0xc0] sm:$0xff]
    %v114 = vld [vmem:[#allocation5 + $0xc8] sm:$0xff]
    %v115 = vld [vmem:[#allocation5 + $0xd0] sm:$0xff]
    %v116 = vld [vmem:[#allocation5 + $0xd8] sm:$0xff]
    %v117 = vld [vmem:[#allocation5 + $0xe0] sm:$0xff]
    %v118 = vld [vmem:[#allocation5 + $0xe8] sm:$0xff]
    %v119 = vld [vmem:[#allocation5 + $0xf0] sm:$0xff]
    %v120 = vld [vmem:[#allocation5 + $0xf8] sm:$0xff]
    %v121 = vld [vmem:[%s2] sm:$0xf]
    %v123 = vlaneseq
    %v124 = vshrl.u32 %v123, 7
    %v125 = vsub.s32 0, %v124
    %v126 = vrot.slane %v121, %v125
    %v127 = vlaneseq
    %v128 = vshrl.u32 %v127, 7
    %v129 = vsub.s32 1, %v128
    %v130 = vrot.slane %v121, %v129
    %v131 = vlaneseq
    %v132 = vshrl.u32 %v131, 7
    %v133 = vsub.s32 2, %v132
    %v134 = vrot.slane %v121, %v133
    %v135 = vlaneseq
    %v136 = vshrl.u32 %v135, 7
    %v137 = vsub.s32 3, %v136
    %v138 = vrot.slane %v121, %v137
    %v175 = vunpack.c.l.b16 %v89
    %v176 = vunpack.c.h.b16 %v89
    %v177 = vunpack.c.l.b16 %v90
    %v178 = vunpack.c.h.b16 %v90
    %v179 = vunpack.c.l.b16 %v91
    %v180 = vunpack.c.h.b16 %v91
    %v181 = vunpack.c.l.b16 %v92
    %v182 = vunpack.c.h.b16 %v92
    %v183 = vunpack.c.l.b16 %v93
    %v184 = vunpack.c.h.b16 %v93
    %v185 = vunpack.c.l.b16 %v94
    %v186 = vunpack.c.h.b16 %v94
    %v187 = vunpack.c.l.b16 %v95
    %v188 = vunpack.c.h.b16 %v95
    %v189 = vunpack.c.l.b16 %v96
    %v190 = vunpack.c.h.b16 %v96
    %v191 = vunpack.c.l.b16 %v97
    %v192 = vunpack.c.h.b16 %v97
    %v193 = vunpack.c.l.b16 %v98
    %v194 = vunpack.c.h.b16 %v98
    %v195 = vunpack.c.l.b16 %v99
    %v196 = vunpack.c.h.b16 %v99
    %v197 = vunpack.c.l.b16 %v100
    %v198 = vunpack.c.h.b16 %v100
    %v199 = vunpack.c.l.b16 %v101
    %v200 = vunpack.c.h.b16 %v101
    %v201 = vunpack.c.l.b16 %v102
    %v202 = vunpack.c.h.b16 %v102
    %v203 = vunpack.c.l.b16 %v103
    %v204 = vunpack.c.h.b16 %v103
    %v205 = vunpack.c.l.b16 %v104
    %v206 = vunpack.c.h.b16 %v104
    %v207 = vunpack.c.l.b16 %v105
    %v208 = vunpack.c.h.b16 %v105
    %v209 = vunpack.c.l.b16 %v106
    %v210 = vunpack.c.h.b16 %v106
    %v211 = vunpack.c.l.b16 %v107
    %v212 = vunpack.c.h.b16 %v107
    %v213 = vunpack.c.l.b16 %v108
    %v214 = vunpack.c.h.b16 %v108
    %v215 = vunpack.c.l.b16 %v109
    %v216 = vunpack.c.h.b16 %v109
    %v217 = vunpack.c.l.b16 %v110
    %v218 = vunpack.c.h.b16 %v110
    %v219 = vunpack.c.l.b16 %v111
    %v220 = vunpack.c.h.b16 %v111
    %v221 = vunpack.c.l.b16 %v112
    %v222 = vunpack.c.h.b16 %v112
    %v223 = vunpack.c.l.b16 %v113
    %v224 = vunpack.c.h.b16 %v113
    %v225 = vunpack.c.l.b16 %v114
    %v226 = vunpack.c.h.b16 %v114
    %v227 = vunpack.c.l.b16 %v115
    %v228 = vunpack.c.h.b16 %v115
    %v229 = vunpack.c.l.b16 %v116
    %v230 = vunpack.c.h.b16 %v116
    %v231 = vunpack.c.l.b16 %v117
    %v232 = vunpack.c.h.b16 %v117
    %v233 = vunpack.c.l.b16 %v118
    %v234 = vunpack.c.h.b16 %v118
    %v235 = vunpack.c.l.b16 %v119
    %v236 = vunpack.c.h.b16 %v119
    %v237 = vunpack.c.l.b16 %v120
    %v238 = vunpack.c.h.b16 %v120
    %v239 = vpack.c.b16 %v179, %v175
    %v240 = vpack.c.b16 %v180, %v176
    %v241 = vpack.c.b16 %v181, %v177
    %v242 = vpack.c.b16 %v182, %v178
    %v243 = vpack.c.b16 %v187, %v183
    %v244 = vpack.c.b16 %v188, %v184
    %v245 = vpack.c.b16 %v189, %v185
    %v246 = vpack.c.b16 %v190, %v186
    %v247 = vpack.c.b16 %v195, %v191
    %v248 = vpack.c.b16 %v196, %v192
    %v249 = vpack.c.b16 %v197, %v193
    %v250 = vpack.c.b16 %v198, %v194
    %v251 = vpack.c.b16 %v203, %v199
    %v252 = vpack.c.b16 %v204, %v200
    %v253 = vpack.c.b16 %v205, %v201
    %v254 = vpack.c.b16 %v206, %v202
    %v255 = vpack.c.b16 %v211, %v207
    %v256 = vpack.c.b16 %v212, %v208
    %v257 = vpack.c.b16 %v213, %v209
    %v258 = vpack.c.b16 %v214, %v210
    %v259 = vpack.c.b16 %v219, %v215
    %v260 = vpack.c.b16 %v220, %v216
    %v261 = vpack.c.b16 %v221, %v217
    %v262 = vpack.c.b16 %v222, %v218
    %v263 = vpack.c.b16 %v227, %v223
    %v264 = vpack.c.b16 %v228, %v224
    %v265 = vpack.c.b16 %v229, %v225
    %v266 = vpack.c.b16 %v230, %v226
    %v267 = vpack.c.b16 %v235, %v231
    %v268 = vpack.c.b16 %v236, %v232
    %v269 = vpack.c.b16 %v237, %v233
    %v270 = vpack.c.b16 %v238, %v234
    %303 = vmatprep.subr.bf16.mxu0 %v240
    %304 = vmatpush1.bf16.msra.mxu0 %v239
    %305 = vmatprep.subr.bf16.mxu0 %v244
    %306 = vmatpush1.bf16.msra.mxu0 %v243
    %307 = vmatprep.subr.bf16.mxu0 %v248
    %308 = vmatpush1.bf16.msra.mxu0 %v247
    %309 = vmatprep.subr.bf16.mxu0 %v252
    %310 = vmatpush1.bf16.msra.mxu0 %v251
    %311 = vmatprep.subr.bf16.mxu0 %v256
    %312 = vmatpush1.bf16.msra.mxu0 %v255
    %313 = vmatprep.subr.bf16.mxu0 %v260
    %314 = vmatpush1.bf16.msra.mxu0 %v259
    %315 = vmatprep.subr.bf16.mxu0 %v264
    %316 = vmatpush1.bf16.msra.mxu0 %v263
    %317 = vmatprep.subr.bf16.mxu0 %v268
    %318 = vmatpush1.bf16.msra.mxu0 %v267
    %319 = vmatprep.subr.bf16.mxu0 0
    %320 = vmatpush1.bf16.msra.mxu0 0
    %321 = vmatprep.subr.bf16.mxu0 0
    %322 = vmatpush1.bf16.msra.mxu0 0
    %323 = vmatprep.subr.bf16.mxu0 0
    %324 = vmatpush1.bf16.msra.mxu0 0
    %325 = vmatprep.subr.bf16.mxu0 0
    %326 = vmatpush1.bf16.msra.mxu0 0
    %327 = vmatprep.subr.bf16.mxu0 0
    %328 = vmatpush1.bf16.msra.mxu0 0
    %329 = vmatprep.subr.bf16.mxu0 0
    %330 = vmatpush1.bf16.msra.mxu0 0
    %331 = vmatprep.subr.bf16.mxu0 0
    %332 = vmatpush1.bf16.msra.mxu0 0
    %333 = vmatprep.subr.bf16.mxu0 0
    %334 = vmatpush1.bf16.msra.mxu0 0
    %335 = vmatprep.mubr.bf16.mxu0 0
    %336 = vmatmul.mubr.bf16.gmra.mrb[0].mxu0 %v88
    %v337 = vpop.f32.mrb[0].mxu0
    %v338 = vadd.f32 %v126, %v337
    %v339 = vpop.f32.mrb[0].mxu0
    %v340 = vadd.f32 %v130, %v339
    %v341 = vpop.f32.mrb[0].mxu0
    %v342 = vadd.f32 %v126, %v341
    %v343 = vpop.f32.mrb[0].mxu0
    %v344 = vadd.f32 %v130, %v343
    %345 = vdwg.mxu0
    %346 = vmatprep.subr.bf16.mxu0 %v242
    %347 = vmatpush1.bf16.msra.mxu0 %v241
    %348 = vmatprep.subr.bf16.mxu0 %v246
    %349 = vmatpush1.bf16.msra.mxu0 %v245
    %350 = vmatprep.subr.bf16.mxu0 %v250
    %351 = vmatpush1.bf16.msra.mxu0 %v249
    %352 = vmatprep.subr.bf16.mxu0 %v254
    %353 = vmatpush1.bf16.msra.mxu0 %v253
    %354 = vmatprep.subr.bf16.mxu0 %v258
    %355 = vmatpush1.bf16.msra.mxu0 %v257
    %356 = vmatprep.subr.bf16.mxu0 %v262
    %357 = vmatpush1.bf16.msra.mxu0 %v261
    %358 = vmatprep.subr.bf16.mxu0 %v266
    %359 = vmatpush1.bf16.msra.mxu0 %v265
    %360 = vmatprep.subr.bf16.mxu0 %v270
    %361 = vmatpush1.bf16.msra.mxu0 %v269
    %362 = vmatprep.subr.bf16.mxu0 0
    %363 = vmatpush1.bf16.msra.mxu0 0
    %364 = vmatprep.subr.bf16.mxu0 0
    %365 = vmatpush1.bf16.msra.mxu0 0
    %366 = vmatprep.subr.bf16.mxu0 0
    %367 = vmatpush1.bf16.msra.mxu0 0
    %368 = vmatprep.subr.bf16.mxu0 0
    %369 = vmatpush1.bf16.msra.mxu0 0
    %370 = vmatprep.subr.bf16.mxu0 0
    %371 = vmatpush1.bf16.msra.mxu0 0
    %372 = vmatprep.subr.bf16.mxu0 0
    %373 = vmatpush1.bf16.msra.mxu0 0
    %374 = vmatprep.subr.bf16.mxu0 0
    %375 = vmatpush1.bf16.msra.mxu0 0
    %376 = vmatprep.subr.bf16.mxu0 0
    %377 = vmatpush1.bf16.msra.mxu0 0
    %378 = vmatprep.mubr.bf16.mxu0 0
    %379 = vmatmul.mubr.bf16.gmra.mrb[0].mxu0 %v88
    %v380 = vpop.f32.mrb[0].mxu0
    %v381 = vadd.f32 %v134, %v380
    %v382 = vpop.f32.mrb[0].mxu0
    %v383 = vadd.f32 %v138, %v382
    %v384 = vpop.f32.mrb[0].mxu0
    %v385 = vadd.f32 %v134, %v384
    %v386 = vpop.f32.mrb[0].mxu0
    %v387 = vadd.f32 %v138, %v386
    %388 = vdwg.mxu0
    %v389 = vpack.c.bf16 %v342, %v338
    %v390 = vpack.c.bf16 %v344, %v340
    %v391 = vpack.c.bf16 %v385, %v381
    %v392 = vpack.c.bf16 %v387, %v383
    %v393 = vld [vmem:[#allocation7] sm:$0xf]
    %v394 = vld [vmem:[#allocation7 + $0x4] sm:$0xf]
    %v395 = vld [vmem:[#allocation7 + $0x8] sm:$0xf]
    %v396 = vld [vmem:[#allocation7 + $0xc] sm:$0xf]
    %v397 = vld [vmem:[#allocation7 + $0x10] sm:$0xf]
    %v398 = vld [vmem:[#allocation7 + $0x14] sm:$0xf]
    %v399 = vld [vmem:[#allocation7 + $0x18] sm:$0xf]
    %v400 = vld [vmem:[#allocation7 + $0x1c] sm:$0xf]
    %v401 = vld [vmem:[#allocation7 + $0x20] sm:$0xf]
    %v402 = vld [vmem:[#allocation7 + $0x24] sm:$0xf]
    %v403 = vld [vmem:[#allocation7 + $0x28] sm:$0xf]
    %v404 = vld [vmem:[#allocation7 + $0x2c] sm:$0xf]
    %v405 = vld [vmem:[#allocation7 + $0x30] sm:$0xf]
    %v406 = vld [vmem:[#allocation7 + $0x34] sm:$0xf]
    %v407 = vld [vmem:[#allocation7 + $0x38] sm:$0xf]
    %v408 = vld [vmem:[#allocation7 + $0x3c] sm:$0xf]
    %v409 = vld [vmem:[#allocation7 + $0x40] sm:$0xf]
    %v410 = vld [vmem:[#allocation7 + $0x44] sm:$0xf]
    %v411 = vld [vmem:[#allocation7 + $0x48] sm:$0xf]
    %v412 = vld [vmem:[#allocation7 + $0x4c] sm:$0xf]
    %v413 = vld [vmem:[#allocation7 + $0x50] sm:$0xf]
    %v414 = vld [vmem:[#allocation7 + $0x54] sm:$0xf]
    %v415 = vld [vmem:[#allocation7 + $0x58] sm:$0xf]
    %v416 = vld [vmem:[#allocation7 + $0x5c] sm:$0xf]
    %v417 = vld [vmem:[#allocation7 + $0x60] sm:$0xf]
    %v418 = vld [vmem:[#allocation7 + $0x64] sm:$0xf]
    %v419 = vld [vmem:[#allocation7 + $0x68] sm:$0xf]
    %v420 = vld [vmem:[#allocation7 + $0x6c] sm:$0xf]
    %v421 = vld [vmem:[#allocation7 + $0x70] sm:$0xf]
    %v422 = vld [vmem:[#allocation7 + $0x74] sm:$0xf]
    %v423 = vld [vmem:[#allocation7 + $0x78] sm:$0xf]
    %v424 = vld [vmem:[#allocation7 + $0x7c] sm:$0xf]
    %v425 = vld [vmem:[%s4] sm:$0x1]
    %v427 = vlaneseq
    %v428 = vshrl.u32 %v427, 7
    %v429 = vsub.s32 0, %v428
    %v430 = vrot.slane %v425, %v429
    %v464 = vunpack.c.l.b16 %v393
    %v465 = vunpack.c.l.b16 %v394
    %v466 = vunpack.c.l.b16 %v395
    %v467 = vunpack.c.l.b16 %v396
    %v468 = vunpack.c.l.b16 %v397
    %v469 = vunpack.c.l.b16 %v398
    %v470 = vunpack.c.l.b16 %v399
    %v471 = vunpack.c.l.b16 %v400
    %v472 = vunpack.c.l.b16 %v401
    %v473 = vunpack.c.l.b16 %v402
    %v474 = vunpack.c.l.b16 %v403
    %v475 = vunpack.c.l.b16 %v404
    %v476 = vunpack.c.l.b16 %v405
    %v477 = vunpack.c.l.b16 %v406
    %v478 = vunpack.c.l.b16 %v407
    %v479 = vunpack.c.l.b16 %v408
    %v480 = vunpack.c.l.b16 %v409
    %v481 = vunpack.c.l.b16 %v410
    %v482 = vunpack.c.l.b16 %v411
    %v483 = vunpack.c.l.b16 %v412
    %v484 = vunpack.c.l.b16 %v413
    %v485 = vunpack.c.l.b16 %v414
    %v486 = vunpack.c.l.b16 %v415
    %v487 = vunpack.c.l.b16 %v416
    %v488 = vunpack.c.l.b16 %v417
    %v489 = vunpack.c.l.b16 %v418
    %v490 = vunpack.c.l.b16 %v419
    %v491 = vunpack.c.l.b16 %v420
    %v492 = vunpack.c.l.b16 %v421
    %v493 = vunpack.c.l.b16 %v422
    %v494 = vunpack.c.l.b16 %v423
    %v495 = vunpack.c.l.b16 %v424
    %v496 = vpack.c.b16 %v465, %v464
    %v497 = vpack.c.b16 %v467, %v466
    %v498 = vpack.c.b16 %v469, %v468
    %v499 = vpack.c.b16 %v471, %v470
    %v500 = vpack.c.b16 %v473, %v472
    %v501 = vpack.c.b16 %v475, %v474
    %v502 = vpack.c.b16 %v477, %v476
    %v503 = vpack.c.b16 %v479, %v478
    %v504 = vpack.c.b16 %v481, %v480
    %v505 = vpack.c.b16 %v483, %v482
    %v506 = vpack.c.b16 %v485, %v484
    %v507 = vpack.c.b16 %v487, %v486
    %v508 = vpack.c.b16 %v489, %v488
    %v509 = vpack.c.b16 %v491, %v490
    %v510 = vpack.c.b16 %v493, %v492
    %v511 = vpack.c.b16 %v495, %v494
    %528 = vmatprep.subr.bf16.mxu0 0
    %529 = vmatpush1.bf16.msra.mxu0 %v496
    %530 = vmatprep.subr.bf16.mxu0 0
    %531 = vmatpush1.bf16.msra.mxu0 %v497
    %532 = vmatprep.subr.bf16.mxu0 0
    %533 = vmatpush1.bf16.msra.mxu0 %v498
    %534 = vmatprep.subr.bf16.mxu0 0
    %535 = vmatpush1.bf16.msra.mxu0 %v499
    %536 = vmatprep.subr.bf16.mxu0 0
    %537 = vmatpush1.bf16.msra.mxu0 %v500
    %538 = vmatprep.subr.bf16.mxu0 0
    %539 = vmatpush1.bf16.msra.mxu0 %v501
    %540 = vmatprep.subr.bf16.mxu0 0
    %541 = vmatpush1.bf16.msra.mxu0 %v502
    %542 = vmatprep.subr.bf16.mxu0 0
    %543 = vmatpush1.bf16.msra.mxu0 %v503
    %544 = vmatprep.subr.bf16.mxu0 0
    %545 = vmatpush1.bf16.msra.mxu0 %v504
    %546 = vmatprep.subr.bf16.mxu0 0
    %547 = vmatpush1.bf16.msra.mxu0 %v505
    %548 = vmatprep.subr.bf16.mxu0 0
    %549 = vmatpush1.bf16.msra.mxu0 %v506
    %550 = vmatprep.subr.bf16.mxu0 0
    %551 = vmatpush1.bf16.msra.mxu0 %v507
    %552 = vmatprep.subr.bf16.mxu0 0
    %553 = vmatpush1.bf16.msra.mxu0 %v508
    %554 = vmatprep.subr.bf16.mxu0 0
    %555 = vmatpush1.bf16.msra.mxu0 %v509
    %556 = vmatprep.subr.bf16.mxu0 0
    %557 = vmatpush1.bf16.msra.mxu0 %v510
    %558 = vmatprep.subr.bf16.mxu0 0
    %559 = vmatpush1.bf16.msra.mxu0 %v511
    %560 = vmatprep.mubr.bf16.mxu0 %v390
    %561 = vmatmul.mubr.bf16.gmra.mrb[0].mxu0 %v389
    %v562 = vpop.f32.mrb[0].mxu0
    %v563 = vadd.f32 %v430, %v562
    %v564 = vpop.f32.mrb[0].mxu0
    %v565 = vpop.f32.mrb[0].mxu0
    %v566 = vadd.f32 %v430, %v565
    %v567 = vpop.f32.mrb[0].mxu0
    %568 = vdwg.mxu0
    %v569 = vadd.f32 %v86, %v563
    %v570 = vadd.f32 %v87, %v566
    %571 = vst [vmem:[#allocation10] sm:$0xff] %v569
    %572 = vst [vmem:[#allocation10 + $0x8] sm:$0xff] %v570
    %v573 = vld [vmem:[#allocation8] sm:$0xf]
    %v574 = vld [vmem:[#allocation8 + $0x4] sm:$0xf]
    %v575 = vld [vmem:[#allocation8 + $0x8] sm:$0xf]
    %v576 = vld [vmem:[#allocation8 + $0xc] sm:$0xf]
    %v577 = vld [vmem:[#allocation8 + $0x10] sm:$0xf]
    %v578 = vld [vmem:[#allocation8 + $0x14] sm:$0xf]
    %v579 = vld [vmem:[#allocation8 + $0x18] sm:$0xf]
    %v580 = vld [vmem:[#allocation8 + $0x1c] sm:$0xf]
    %v581 = vld [vmem:[#allocation8 + $0x20] sm:$0xf]
    %v582 = vld [vmem:[#allocation8 + $0x24] sm:$0xf]
    %v583 = vld [vmem:[#allocation8 + $0x28] sm:$0xf]
    %v584 = vld [vmem:[#allocation8 + $0x2c] sm:$0xf]
    %v585 = vld [vmem:[#allocation8 + $0x30] sm:$0xf]
    %v586 = vld [vmem:[#allocation8 + $0x34] sm:$0xf]
    %v587 = vld [vmem:[#allocation8 + $0x38] sm:$0xf]
    %v588 = vld [vmem:[#allocation8 + $0x3c] sm:$0xf]
    %v589 = vld [vmem:[#allocation8 + $0x40] sm:$0xf]
    %v590 = vld [vmem:[#allocation8 + $0x44] sm:$0xf]
    %v591 = vld [vmem:[#allocation8 + $0x48] sm:$0xf]
    %v592 = vld [vmem:[#allocation8 + $0x4c] sm:$0xf]
    %v593 = vld [vmem:[#allocation8 + $0x50] sm:$0xf]
    %v594 = vld [vmem:[#allocation8 + $0x54] sm:$0xf]
    %v595 = vld [vmem:[#allocation8 + $0x58] sm:$0xf]
    %v596 = vld [vmem:[#allocation8 + $0x5c] sm:$0xf]
    %v597 = vld [vmem:[#allocation8 + $0x60] sm:$0xf]
    %v598 = vld [vmem:[#allocation8 + $0x64] sm:$0xf]
    %v599 = vld [vmem:[#allocation8 + $0x68] sm:$0xf]
    %v600 = vld [vmem:[#allocation8 + $0x6c] sm:$0xf]
    %v601 = vld [vmem:[#allocation8 + $0x70] sm:$0xf]
    %v602 = vld [vmem:[#allocation8 + $0x74] sm:$0xf]
    %v603 = vld [vmem:[#allocation8 + $0x78] sm:$0xf]
    %v604 = vld [vmem:[#allocation8 + $0x7c] sm:$0xf]
    %v605 = vld [vmem:[%s6] sm:$0x1]
    %v607 = vlaneseq
    %v608 = vshrl.u32 %v607, 7
    %v609 = vsub.s32 0, %v608
    %v610 = vrot.slane %v605, %v609
    %v644 = vunpack.c.l.b16 %v573
    %v645 = vunpack.c.l.b16 %v574
    %v646 = vunpack.c.l.b16 %v575
    %v647 = vunpack.c.l.b16 %v576
    %v648 = vunpack.c.l.b16 %v577
    %v649 = vunpack.c.l.b16 %v578
    %v650 = vunpack.c.l.b16 %v579
    %v651 = vunpack.c.l.b16 %v580
    %v652 = vunpack.c.l.b16 %v581
    %v653 = vunpack.c.l.b16 %v582
    %v654 = vunpack.c.l.b16 %v583
    %v655 = vunpack.c.l.b16 %v584
    %v656 = vunpack.c.l.b16 %v585
    %v657 = vunpack.c.l.b16 %v586
    %v658 = vunpack.c.l.b16 %v587
    %v659 = vunpack.c.l.b16 %v588
    %v660 = vunpack.c.l.b16 %v589
    %v661 = vunpack.c.l.b16 %v590
    %v662 = vunpack.c.l.b16 %v591
    %v663 = vunpack.c.l.b16 %v592
    %v664 = vunpack.c.l.b16 %v593
    %v665 = vunpack.c.l.b16 %v594
    %v666 = vunpack.c.l.b16 %v595
    %v667 = vunpack.c.l.b16 %v596
    %v668 = vunpack.c.l.b16 %v597
    %v669 = vunpack.c.l.b16 %v598
    %v670 = vunpack.c.l.b16 %v599
    %v671 = vunpack.c.l.b16 %v600
    %v672 = vunpack.c.l.b16 %v601
    %v673 = vunpack.c.l.b16 %v602
    %v674 = vunpack.c.l.b16 %v603
    %v675 = vunpack.c.l.b16 %v604
    %v676 = vpack.c.b16 %v645, %v644
    %v677 = vpack.c.b16 %v647, %v646
    %v678 = vpack.c.b16 %v649, %v648
    %v679 = vpack.c.b16 %v651, %v650
    %v680 = vpack.c.b16 %v653, %v652
    %v681 = vpack.c.b16 %v655, %v654
    %v682 = vpack.c.b16 %v657, %v656
    %v683 = vpack.c.b16 %v659, %v658
    %v684 = vpack.c.b16 %v661, %v660
    %v685 = vpack.c.b16 %v663, %v662
    %v686 = vpack.c.b16 %v665, %v664
    %v687 = vpack.c.b16 %v667, %v666
    %v688 = vpack.c.b16 %v669, %v668
    %v689 = vpack.c.b16 %v671, %v670
    %v690 = vpack.c.b16 %v673, %v672
    %v691 = vpack.c.b16 %v675, %v674
    %708 = vmatprep.subr.bf16.mxu0 0
    %709 = vmatpush1.bf16.msra.mxu0 %v676
    %710 = vmatprep.subr.bf16.mxu0 0
    %711 = vmatpush1.bf16.msra.mxu0 %v677
    %712 = vmatprep.subr.bf16.mxu0 0
    %713 = vmatpush1.bf16.msra.mxu0 %v678
    %714 = vmatprep.subr.bf16.mxu0 0
    %715 = vmatpush1.bf16.msra.mxu0 %v679
    %716 = vmatprep.subr.bf16.mxu0 0
    %717 = vmatpush1.bf16.msra.mxu0 %v680
    %718 = vmatprep.subr.bf16.mxu0 0
    %719 = vmatpush1.bf16.msra.mxu0 %v681
    %720 = vmatprep.subr.bf16.mxu0 0
    %721 = vmatpush1.bf16.msra.mxu0 %v682
    %722 = vmatprep.subr.bf16.mxu0 0
    %723 = vmatpush1.bf16.msra.mxu0 %v683
    %724 = vmatprep.subr.bf16.mxu0 0
    %725 = vmatpush1.bf16.msra.mxu0 %v684
    %726 = vmatprep.subr.bf16.mxu0 0
    %727 = vmatpush1.bf16.msra.mxu0 %v685
    %728 = vmatprep.subr.bf16.mxu0 0
    %729 = vmatpush1.bf16.msra.mxu0 %v686
    %730 = vmatprep.subr.bf16.mxu0 0
    %731 = vmatpush1.bf16.msra.mxu0 %v687
    %732 = vmatprep.subr.bf16.mxu0 0
    %733 = vmatpush1.bf16.msra.mxu0 %v688
    %734 = vmatprep.subr.bf16.mxu0 0
    %735 = vmatpush1.bf16.msra.mxu0 %v689
    %736 = vmatprep.subr.bf16.mxu0 0
    %737 = vmatpush1.bf16.msra.mxu0 %v690
    %738 = vmatprep.subr.bf16.mxu0 0
    %739 = vmatpush1.bf16.msra.mxu0 %v691
    %740 = vmatprep.mubr.bf16.mxu0 %v392
    %741 = vmatmul.mubr.bf16.gmra.mrb[0].mxu0 %v391
    %v742 = vpop.f32.mrb[0].mxu0
    %v743 = vadd.f32 %v610, %v742
    %v744 = vpop.f32.mrb[0].mxu0
    %v745 = vpop.f32.mrb[0].mxu0
    %v746 = vadd.f32 %v610, %v745
    %v747 = vpop.f32.mrb[0].mxu0
    %748 = vdwg.mxu0
    %v749 = vadd.f32 %v86, %v743
    %v750 = vadd.f32 %v87, %v746
    %751 = vst [vmem:[#allocation11] sm:$0xff] %v749
    %752 = vst [vmem:[#allocation11 + $0x8] sm:$0xff] %v750
    // Predicated region
    $region46: #{tpu_custom_call.1} parent=1 // pred_check
      _
    $region47: #{tpu_custom_call.1} parent=1 // pred_check_branch
      %754 = sbr.rel (0) target = $region49
    $region48: #{tpu_custom_call.1} parent=1 // pred_region
      %s756 = ssub.s32 256, 256
      %757 = vsyncadd [#allocation4], %s756
      %s758 = sshll.u32 [#allocation10], 4
      %s759 = int_to_ptr.vmem [resolvable:$true] %s758
      %764 = dma.vmem_to_hbm [thread:$0]  %s759, 256, %s7, [#allocation4], 128, 128, 8
    $region49: #{tpu_custom_call.1} parent=1 // pred_fallthru
      _
    // Predicated region
    $region50: #{tpu_custom_call.1} parent=1 // pred_check
      _
    $region51: #{tpu_custom_call.1} parent=1 // pred_check_branch
      %766 = sbr.rel (0) target = $region53
    $region52: #{tpu_custom_call.1} parent=1 // pred_region
      %s768 = ssub.s32 256, 256
      %769 = vsyncadd [#allocation12], %s768
      %s770 = sshll.u32 [#allocation11], 4
      %s771 = int_to_ptr.vmem [resolvable:$true] %s770
      %776 = dma.vmem_to_hbm [thread:$0]  %s771, 256, %s8, [#allocation12], 128, 128, 8
    $region53: #{tpu_custom_call.1} parent=1 // pred_fallthru
      _
    // Predicated region
    $region54: #{tpu_custom_call.1} parent=1 // pred_check
      _
    $region55: #{tpu_custom_call.1} parent=1 // pred_check_branch
      %778 = sbr.rel (0) target = $region57
    $region56: #{tpu_custom_call.1} parent=1 // pred_region
      %779 = dma.done [#allocation4], 256
    $region57: #{tpu_custom_call.1} parent=1 // pred_fallthru
      _
    // Predicated region
    $region58: #{tpu_custom_call.1} parent=1 // pred_check
      _
    $region59: #{tpu_custom_call.1} parent=1 // pred_check_branch
      %781 = sbr.rel (0) target = $region61
    $region60: #{tpu_custom_call.1} parent=1 // pred_region
      %782 = dma.done [#allocation12], 256
    $region61: #{tpu_custom_call.1} parent=1 // pred_fallthru
      _
    %783 = vsyncpa [#allocation3], 1
    %784 = vsyncpa [#allocation6], 1
    %785 = vsyncpa [#allocation9], 1
    %786 = vsyncpa [#allocation4], 1
    %787 = vsyncpa [#allocation12], 1

</llo_original>
